<compile_context>
chip_gen: v6e
topology: v6e:2x2x1
jax: 0.10.0
libtpu: 0.0.40
codegen_flags: <defaults>
</compile_context>

<pallas_src>
import functools

import jax
import jax.numpy as jnp
from jax import lax
from jax.experimental import pallas as pl
from jax.experimental.pallas import tpu as pltpu


_UNROLL_STEPS_MAX = 4   # statically unroll the adaptation loop up to this count


# ------------------------------------------------------------------ fused kernel

def _mop_fused_kernel(x_ref, w_ref, b_ref, lv_ref,
                      out_ref, w_out_ref, b_out_ref, lv_out_ref,
                      *, steps, dz_scale, c1, c2):
    """All `steps` adaptation iterations, everything VMEM-resident.

    x_ref  : [B, D]   flattened input (read once)
    w_ref  : [NC, D]  Linear weight   -> w_out_ref  (SGD-updated, aliased)
    b_ref  : [1, NC]  Linear bias     -> b_out_ref  (SGD-updated, aliased)
    lv_ref : [NC, D]  logvar0         -> lv_out_ref (SGD-updated, aliased)
    out_ref: [B, NC]  logits of the LAST step's forward (pre-update weights)

    Constants (compile-time Python floats):
      dz_scale = lr * entr_par / B            (lr folded into the logit grad)
      c1       = lr * kl_par * 0.5 / k        (k = weight.numel())
      c2       = c1 / p_var                   (p_var = var_scal * sigma0)
    """
    x = x_ref[...]                                   # [B, D], loop-invariant

    # Working parameter copies live in the (aliased) output VMEM buffers.
    w_out_ref[...] = w_ref[...]
    b_out_ref[...] = b_ref[...]
    lv_out_ref[...] = lv_ref[...]

    def adapt_step(store_logits):
        w = w_out_ref[...]
        b = b_out_ref[...]
        lv = lv_out_ref[...]

        # ---- model(x): logits = x @ W^T + b            (MXU)
        z = lax.dot_general(x, w, (((1,), (1,)), ((), ())),
                            preferred_element_type=jnp.float32) + b   # [B, NC]

        # Only the final step's logits are returned by Mop.forward; skip the
        # masked (NC < 128 lanes) store on every other iteration.
        if isinstance(store_logits, bool):
            if store_logits:
                out_ref[...] = z
        else:
            @pl.when(store_logits)
            def _():
                out_ref[...] = z

        # ---- analytic grad of lr * entr_par * softmax_entropy(z).mean(0) wrt z
        m = jnp.max(z, axis=-1, keepdims=True)
        e = jnp.exp(z - m)
        s = jnp.sum(e, axis=-1, keepdims=True)
        inv_s = pl.reciprocal(s, approx=False)        # EUP slot, frees VALU
        p = e * inv_s
        logp = (z - m) - jnp.log(s)
        ent = -jnp.sum(p * logp, axis=-1, keepdims=True)
        g = (-p * (logp + ent)) * dz_scale            # lr*entr_par/B folded once

        # ---- weight / bias grads (already lr-scaled through g)
        dw = lax.dot_general(g, x, (((0,), (0,)), ((), ())),
                             preferred_element_type=jnp.float32)       # [NC, D]
        db = jnp.sum(g, axis=0, keepdims=True)                         # [1, NC]

        # ---- optimizer.step() (plain SGD), in place in VMEM.
        # KL = 0.5*(sum(log p_var - lv) - k + sum(exp(lv)/p_var)) / k depends
        # only on logvar0, so its whole gradient folds into c1/c2:
        #   lv_new = lv - lr*kl_par*0.5/k * (exp(lv)/p_var - 1)
        #          = (lv + c1) - c2 * exp(lv)
        w_out_ref[...] = w - dw
        b_out_ref[...] = b - db
        lv_out_ref[...] = (lv + c1) - c2 * jnp.exp(lv)

    if steps <= _UNROLL_STEPS_MAX:
        # Static unroll: last-step store is resolved at trace time (no pl.when).
        for step in range(steps):
            adapt_step(step == steps - 1)
    else:
        @pl.loop(0, steps)
        def _(step):
            adapt_step(step == steps - 1)   # traced predicate -> pl.when


# ------------------------------------------------------------------ wrappers

def _mop_forward_impl(x, weight, bias, logvar0, *,
                      steps, var_scal, kl_par, entr_par, sigma0, lr):
    B = x.shape[0]
    x_flat = x.reshape(B, -1).astype(jnp.float32)
    D = x_flat.shape[1]
    NC = weight.shape[0]

    p_var = float(var_scal) * float(sigma0)      # variance_scaling * 1 * sigma0
    k = float(NC * D)                            # weight.numel()
    c1 = float(lr) * float(kl_par) * 0.5 / k
    c2 = c1 / p_var

    # VMEM scaling guard (review item): whole-array residency holds roughly
    # x + 2*(W, logvar0) + bias/logits + [NC,D] temporaries.  Keep well under
    # the v7x default scoped VMEM (32 MiB); tile D with a grid axis otherwise.
    live_bytes = 4 * (B * D + 6 * NC * D + 4 * NC + 2 * B * NC)
    assert live_bytes < 24 * 1024 * 1024, (
        "Mop fused kernel: live set too large for whole-array VMEM residency; "
        "tile the D axis with a grid.")

    kernel = functools.partial(
        _mop_fused_kernel,
        steps=int(steps),
        dz_scale=float(lr) * float(entr_par) / float(B),
        c1=c1,
        c2=c2,
    )

    vmem = pl.BlockSpec(memory_space=pltpu.MemorySpace.VMEM)
    logits, w_new, b_new, lv_new = pl.pallas_call(
        kernel,
        out_shape=(jax.ShapeDtypeStruct((B, NC), jnp.float32),
                   jax.ShapeDtypeStruct((NC, D), jnp.float32),
                   jax.ShapeDtypeStruct((1, NC), jnp.float32),
                   jax.ShapeDtypeStruct((NC, D), jnp.float32)),
        in_specs=[vmem, vmem, vmem, vmem],
        out_specs=(vmem, vmem, vmem, vmem),
        # SGD updates write the params in place at the HBM level.
        input_output_aliases={1: 1, 2: 2, 3: 3},
    )(x_flat, weight, bias.reshape(1, NC), logvar0)

    new_params = {"weight": w_new, "bias": b_new.reshape(-1), "logvar0": lv_new}
    return logits, new_params


@functools.lru_cache(maxsize=None)
def _get_mop_fn(steps, var_scal, kl_par, entr_par, sigma0, lr):
    return jax.jit(functools.partial(
        _mop_forward_impl,
        steps=steps, var_scal=var_scal, kl_par=kl_par,
        entr_par=entr_par, sigma0=sigma0, lr=lr))


def mop_forward(x, params, cfg):
    """Equivalent of Mop.forward: `steps` x forward_and_adapt, return logits."""
    steps = int(cfg["steps"])
    assert steps >= 1, "tent requires >= 1 step(s) to forward and update"
    # TODO(synk): episodic reset / load_state_dict is host-side state
    # management with no kernel content; episodic=False here.
    # TODO(synk): on v7x the independent logvar0/KL chain could run on the
    # second TensorCore (pl.core_map); negligible at NC*D = 10*1024, so the
    # single-core fused kernel is kept.
    fn = _get_mop_fn(steps, float(cfg["var_scal"]),
                     float(cfg["kl_par"]), float(cfg["entr_par"]),
                     float(cfg["sigma0"]), float(cfg["lr"]))
    return fn(x, params["weight"], params["bias"], params["logvar0"])


# ------------------------------------------------------------------ main

if __name__ == "__main__":
    B, C, H, W = 2, 4, 16, 16
    NC = 10
    D = C * H * W

    key = jax.random.PRNGKey(0)
    kx, kw, klv = jax.random.split(key, 3)

    x = jax.random.normal(kx, (B, C, H, W), dtype=jnp.float32)

    params = {
        "weight": 0.02 * jax.random.normal(kw, (NC, D), dtype=jnp.float32),
        "bias": jnp.zeros((NC,), dtype=jnp.float32),
        "logvar0": (-4.0 + 0.01 * jax.random.normal(klv, (NC, D),
                                                    dtype=jnp.float32)),
    }

    cfg = {
        "steps": 2,          # cfg.OPTIM.STEPS
        "episodic": False,   # cfg.MODEL.EPISODIC
        "var_scal": 1.0,     # cfg.var_scal
        "kl_par": 1.0,       # cfg.kl_par
        "entr_par": 1.0,     # cfg.entr_par
        "sigma0": 0.1,       # module.sigma0
        "lr": 1e-3,          # SGD optimizer lr
    }

    outputs, new_params = mop_forward(x, params, cfg)
    jax.block_until_ready(outputs)
    jax.block_until_ready(new_params)

    assert outputs.shape == (B, NC) and outputs.dtype == jnp.float32
    assert new_params["weight"].shape == (NC, D)
    assert new_params["bias"].shape == (NC,)
    assert new_params["logvar0"].shape == (NC, D)
    print("KERNEL_OK")
</pallas_src>

<mosaic_0001>
module attributes {stable_mosaic.version = 11 : i64} {
  func.func @_mop_fused_kernel(%arg0: memref<2x1024xf32, #tpu.memory_space<vmem>>, %arg1: memref<10x1024xf32, #tpu.memory_space<vmem>>, %arg2: memref<1x10xf32, #tpu.memory_space<vmem>>, %arg3: memref<10x1024xf32, #tpu.memory_space<vmem>>, %arg4: memref<2x10xf32, #tpu.memory_space<vmem>>, %arg5: memref<10x1024xf32, #tpu.memory_space<vmem>>, %arg6: memref<1x10xf32, #tpu.memory_space<vmem>>, %arg7: memref<10x1024xf32, #tpu.memory_space<vmem>>) attributes {dimension_semantics = [], scalar_prefetch = 0 : i64, scratch_operands = 0 : i64, tpu.core_type = #tpu.core_type<tc>} {
    %c0 = arith.constant 0 : index
    %c0_0 = arith.constant 0 : index
    %0 = vector.load %arg0[%c0, %c0_0] : memref<2x1024xf32, #tpu.memory_space<vmem>>, vector<2x1024xf32>
    %c0_1 = arith.constant 0 : index
    %c0_2 = arith.constant 0 : index
    %1 = vector.load %arg1[%c0_1, %c0_2] : memref<10x1024xf32, #tpu.memory_space<vmem>>, vector<10x1024xf32>
    %c0_3 = arith.constant 0 : index
    %c0_4 = arith.constant 0 : index
    %2 = vector.load %arg5[%c0_3, %c0_4] : memref<10x1024xf32, #tpu.memory_space<vmem>>, vector<10x1024xf32>
    tpu.vector_store %arg5[%c0_3, %c0_4], %1 {strides = array<i32>} : memref<10x1024xf32, #tpu.memory_space<vmem>>, vector<10x1024xf32>,
    %c0_5 = arith.constant 0 : index
    %c0_6 = arith.constant 0 : index
    %3 = vector.load %arg2[%c0_5, %c0_6] : memref<1x10xf32, #tpu.memory_space<vmem>>, vector<1x10xf32>
    %c0_7 = arith.constant 0 : index
    %c0_8 = arith.constant 0 : index
    %4 = vector.load %arg6[%c0_7, %c0_8] : memref<1x10xf32, #tpu.memory_space<vmem>>, vector<1x10xf32>
    tpu.vector_store %arg6[%c0_7, %c0_8], %3 {strides = array<i32>} : memref<1x10xf32, #tpu.memory_space<vmem>>, vector<1x10xf32>,
    %c0_9 = arith.constant 0 : index
    %c0_10 = arith.constant 0 : index
    %5 = vector.load %arg3[%c0_9, %c0_10] : memref<10x1024xf32, #tpu.memory_space<vmem>>, vector<10x1024xf32>
    %c0_11 = arith.constant 0 : index
    %c0_12 = arith.constant 0 : index
    %6 = vector.load %arg7[%c0_11, %c0_12] : memref<10x1024xf32, #tpu.memory_space<vmem>>, vector<10x1024xf32>
    tpu.vector_store %arg7[%c0_11, %c0_12], %5 {strides = array<i32>} : memref<10x1024xf32, #tpu.memory_space<vmem>>, vector<10x1024xf32>,
    %c0_13 = arith.constant 0 : index
    %c0_14 = arith.constant 0 : index
    %7 = vector.load %arg5[%c0_13, %c0_14] : memref<10x1024xf32, #tpu.memory_space<vmem>>, vector<10x1024xf32>
    %c0_15 = arith.constant 0 : index
    %c0_16 = arith.constant 0 : index
    %8 = vector.load %arg6[%c0_15, %c0_16] : memref<1x10xf32, #tpu.memory_space<vmem>>, vector<1x10xf32>
    %c0_17 = arith.constant 0 : index
    %c0_18 = arith.constant 0 : index
    %9 = vector.load %arg7[%c0_17, %c0_18] : memref<10x1024xf32, #tpu.memory_space<vmem>>, vector<10x1024xf32>
    %cst = arith.constant dense<0.000000e+00> : vector<2x10xf32>
    %10 = tpu.matmul %0, %7, %cst {dimension_numbers = #tpu.dot_dimension_numbers<[1], [1], [0], [0], [0, 0, 1, 0], [], []>} : vector<2x1024xf32>, vector<10x1024xf32>, vector<2x10xf32> -> vector<2x10xf32>
    %11 = vector.broadcast %8 : vector<1x10xf32> to vector<2x10xf32>
    %12 = arith.addf %10, %11 : vector<2x10xf32>
    %cst_19 = arith.constant dense<0xFF800000> : vector<2xf32>
    %13 = vector.multi_reduction <maximumf>, %12, %cst_19 [1] : vector<2x10xf32> to vector<2xf32>
    %14 = vector.shape_cast %13 : vector<2xf32> to vector<2x1xf32>
    %15 = vector.broadcast %14 : vector<2x1xf32> to vector<2x10xf32>
    %16 = arith.subf %12, %15 : vector<2x10xf32>
    %17 = math.exp %16 : vector<2x10xf32>
    %cst_20 = arith.constant dense<0.000000e+00> : vector<2xf32>
    %18 = vector.multi_reduction <add>, %17, %cst_20 [1] : vector<2x10xf32> to vector<2xf32>
    %19 = vector.shape_cast %18 : vector<2xf32> to vector<2x1xf32>
    %20 = tpu.reciprocal %19 : vector<2x1xf32> -> vector<2x1xf32>
    %21 = vector.broadcast %20 : vector<2x1xf32> to vector<2x10xf32>
    %22 = arith.mulf %17, %21 : vector<2x10xf32>
    %23 = vector.broadcast %14 : vector<2x1xf32> to vector<2x10xf32>
    %24 = arith.subf %12, %23 : vector<2x10xf32>
    %25 = math.log %19 : vector<2x1xf32>
    %26 = vector.broadcast %25 : vector<2x1xf32> to vector<2x10xf32>
    %27 = arith.subf %24, %26 : vector<2x10xf32>
    %28 = arith.mulf %22, %27 : vector<2x10xf32>
    %cst_21 = arith.constant dense<0.000000e+00> : vector<2xf32>
    %29 = vector.multi_reduction <add>, %28, %cst_21 [1] : vector<2x10xf32> to vector<2xf32>
    %30 = vector.shape_cast %29 : vector<2xf32> to vector<2x1xf32>
    %cst_22 = arith.constant 0.000000e+00 : f32
    %31 = vector.broadcast %cst_22 : f32 to vector<2x1xf32>
    %32 = arith.subf %31, %30 : vector<2x1xf32>
    %cst_23 = arith.constant 0.000000e+00 : f32
    %33 = vector.broadcast %cst_23 : f32 to vector<2x10xf32>
    %34 = arith.subf %33, %22 : vector<2x10xf32>
    %35 = vector.broadcast %32 : vector<2x1xf32> to vector<2x10xf32>
    %36 = arith.addf %27, %35 : vector<2x10xf32>
    %37 = arith.mulf %34, %36 : vector<2x10xf32>
    %cst_24 = arith.constant 5.000000e-04 : f32
    %38 = vector.broadcast %cst_24 : f32 to vector<2x10xf32>
    %39 = arith.mulf %37, %38 : vector<2x10xf32>
    %cst_25 = arith.constant dense<0.000000e+00> : vector<10x1024xf32>
    %40 = tpu.matmul %39, %0, %cst_25 {dimension_numbers = #tpu.dot_dimension_numbers<[0], [0], [1], [1], [0, 1, 1, 1], [], []>} : vector<2x10xf32>, vector<2x1024xf32>, vector<10x1024xf32> -> vector<10x1024xf32>
    %cst_26 = arith.constant dense<0.000000e+00> : vector<10xf32>
    %41 = vector.multi_reduction <add>, %39, %cst_26 [0] : vector<2x10xf32> to vector<10xf32>
    %42 = vector.shape_cast %41 : vector<10xf32> to vector<1x10xf32>
    %43 = arith.subf %7, %40 : vector<10x1024xf32>
    %c0_27 = arith.constant 0 : index
    %c0_28 = arith.constant 0 : index
    %44 = vector.load %arg5[%c0_27, %c0_28] : memref<10x1024xf32, #tpu.memory_space<vmem>>, vector<10x1024xf32>
    tpu.vector_store %arg5[%c0_27, %c0_28], %43 {strides = array<i32>} : memref<10x1024xf32, #tpu.memory_space<vmem>>, vector<10x1024xf32>,
    %45 = arith.subf %8, %42 : vector<1x10xf32>
    %c0_29 = arith.constant 0 : index
    %c0_30 = arith.constant 0 : index
    %46 = vector.load %arg6[%c0_29, %c0_30] : memref<1x10xf32, #tpu.memory_space<vmem>>, vector<1x10xf32>
    tpu.vector_store %arg6[%c0_29, %c0_30], %45 {strides = array<i32>} : memref<1x10xf32, #tpu.memory_space<vmem>>, vector<1x10xf32>,
    %cst_31 = arith.constant 4.88281238E-8 : f32
    %47 = vector.broadcast %cst_31 : f32 to vector<10x1024xf32>
    %48 = arith.addf %9, %47 : vector<10x1024xf32>
    %49 = math.exp %9 : vector<10x1024xf32>
    %cst_32 = arith.constant 4.88281273E-7 : f32
    %50 = vector.broadcast %cst_32 : f32 to vector<10x1024xf32>
    %51 = arith.mulf %50, %49 : vector<10x1024xf32>
    %52 = arith.subf %48, %51 : vector<10x1024xf32>
    %c0_33 = arith.constant 0 : index
    %c0_34 = arith.constant 0 : index
    %53 = vector.load %arg7[%c0_33, %c0_34] : memref<10x1024xf32, #tpu.memory_space<vmem>>, vector<10x1024xf32>
    tpu.vector_store %arg7[%c0_33, %c0_34], %52 {strides = array<i32>} : memref<10x1024xf32, #tpu.memory_space<vmem>>, vector<10x1024xf32>,
    %c0_35 = arith.constant 0 : index
    %c0_36 = arith.constant 0 : index
    %54 = vector.load %arg5[%c0_35, %c0_36] : memref<10x1024xf32, #tpu.memory_space<vmem>>, vector<10x1024xf32>
    %c0_37 = arith.constant 0 : index
    %c0_38 = arith.constant 0 : index
    %55 = vector.load %arg6[%c0_37, %c0_38] : memref<1x10xf32, #tpu.memory_space<vmem>>, vector<1x10xf32>
    %c0_39 = arith.constant 0 : index
    %c0_40 = arith.constant 0 : index
    %56 = vector.load %arg7[%c0_39, %c0_40] : memref<10x1024xf32, #tpu.memory_space<vmem>>, vector<10x1024xf32>
    %cst_41 = arith.constant dense<0.000000e+00> : vector<2x10xf32>
    %57 = tpu.matmul %0, %54, %cst_41 {dimension_numbers = #tpu.dot_dimension_numbers<[1], [1], [0], [0], [0, 0, 1, 0], [], []>} : vector<2x1024xf32>, vector<10x1024xf32>, vector<2x10xf32> -> vector<2x10xf32>
    %58 = vector.broadcast %55 : vector<1x10xf32> to vector<2x10xf32>
    %59 = arith.addf %57, %58 : vector<2x10xf32>
    %c0_42 = arith.constant 0 : index
    %c0_43 = arith.constant 0 : index
    %60 = vector.load %arg4[%c0_42, %c0_43] : memref<2x10xf32, #tpu.memory_space<vmem>>, vector<2x10xf32>
    tpu.vector_store %arg4[%c0_42, %c0_43], %59 {strides = array<i32>} : memref<2x10xf32, #tpu.memory_space<vmem>>, vector<2x10xf32>,
    %cst_44 = arith.constant dense<0xFF800000> : vector<2xf32>
    %61 = vector.multi_reduction <maximumf>, %59, %cst_44 [1] : vector<2x10xf32> to vector<2xf32>
    %62 = vector.shape_cast %61 : vector<2xf32> to vector<2x1xf32>
    %63 = vector.broadcast %62 : vector<2x1xf32> to vector<2x10xf32>
    %64 = arith.subf %59, %63 : vector<2x10xf32>
    %65 = math.exp %64 : vector<2x10xf32>
    %cst_45 = arith.constant dense<0.000000e+00> : vector<2xf32>
    %66 = vector.multi_reduction <add>, %65, %cst_45 [1] : vector<2x10xf32> to vector<2xf32>
    %67 = vector.shape_cast %66 : vector<2xf32> to vector<2x1xf32>
    %68 = tpu.reciprocal %67 : vector<2x1xf32> -> vector<2x1xf32>
    %69 = vector.broadcast %68 : vector<2x1xf32> to vector<2x10xf32>
    %70 = arith.mulf %65, %69 : vector<2x10xf32>
    %71 = vector.broadcast %62 : vector<2x1xf32> to vector<2x10xf32>
    %72 = arith.subf %59, %71 : vector<2x10xf32>
    %73 = math.log %67 : vector<2x1xf32>
    %74 = vector.broadcast %73 : vector<2x1xf32> to vector<2x10xf32>
    %75 = arith.subf %72, %74 : vector<2x10xf32>
    %76 = arith.mulf %70, %75 : vector<2x10xf32>
    %cst_46 = arith.constant dense<0.000000e+00> : vector<2xf32>
    %77 = vector.multi_reduction <add>, %76, %cst_46 [1] : vector<2x10xf32> to vector<2xf32>
    %78 = vector.shape_cast %77 : vector<2xf32> to vector<2x1xf32>
    %cst_47 = arith.constant 0.000000e+00 : f32
    %79 = vector.broadcast %cst_47 : f32 to vector<2x1xf32>
    %80 = arith.subf %79, %78 : vector<2x1xf32>
    %cst_48 = arith.constant 0.000000e+00 : f32
    %81 = vector.broadcast %cst_48 : f32 to vector<2x10xf32>
    %82 = arith.subf %81, %70 : vector<2x10xf32>
    %83 = vector.broadcast %80 : vector<2x1xf32> to vector<2x10xf32>
    %84 = arith.addf %75, %83 : vector<2x10xf32>
    %85 = arith.mulf %82, %84 : vector<2x10xf32>
    %cst_49 = arith.constant 5.000000e-04 : f32
    %86 = vector.broadcast %cst_49 : f32 to vector<2x10xf32>
    %87 = arith.mulf %85, %86 : vector<2x10xf32>
    %cst_50 = arith.constant dense<0.000000e+00> : vector<10x1024xf32>
    %88 = tpu.matmul %87, %0, %cst_50 {dimension_numbers = #tpu.dot_dimension_numbers<[0], [0], [1], [1], [0, 1, 1, 1], [], []>} : vector<2x10xf32>, vector<2x1024xf32>, vector<10x1024xf32> -> vector<10x1024xf32>
    %cst_51 = arith.constant dense<0.000000e+00> : vector<10xf32>
    %89 = vector.multi_reduction <add>, %87, %cst_51 [0] : vector<2x10xf32> to vector<10xf32>
    %90 = vector.shape_cast %89 : vector<10xf32> to vector<1x10xf32>
    %91 = arith.subf %54, %88 : vector<10x1024xf32>
    %c0_52 = arith.constant 0 : index
    %c0_53 = arith.constant 0 : index
    %92 = vector.load %arg5[%c0_52, %c0_53] : memref<10x1024xf32, #tpu.memory_space<vmem>>, vector<10x1024xf32>
    tpu.vector_store %arg5[%c0_52, %c0_53], %91 {strides = array<i32>} : memref<10x1024xf32, #tpu.memory_space<vmem>>, vector<10x1024xf32>,
    %93 = arith.subf %55, %90 : vector<1x10xf32>
    %c0_54 = arith.constant 0 : index
    %c0_55 = arith.constant 0 : index
    %94 = vector.load %arg6[%c0_54, %c0_55] : memref<1x10xf32, #tpu.memory_space<vmem>>, vector<1x10xf32>
    tpu.vector_store %arg6[%c0_54, %c0_55], %93 {strides = array<i32>} : memref<1x10xf32, #tpu.memory_space<vmem>>, vector<1x10xf32>,
    %cst_56 = arith.constant 4.88281238E-8 : f32
    %95 = vector.broadcast %cst_56 : f32 to vector<10x1024xf32>
    %96 = arith.addf %56, %95 : vector<10x1024xf32>
    %97 = math.exp %56 : vector<10x1024xf32>
    %cst_57 = arith.constant 4.88281273E-7 : f32
    %98 = vector.broadcast %cst_57 : f32 to vector<10x1024xf32>
    %99 = arith.mulf %98, %97 : vector<10x1024xf32>
    %100 = arith.subf %96, %99 : vector<10x1024xf32>
    %c0_58 = arith.constant 0 : index
    %c0_59 = arith.constant 0 : index
    %101 = vector.load %arg7[%c0_58, %c0_59] : memref<10x1024xf32, #tpu.memory_space<vmem>>, vector<10x1024xf32>
    tpu.vector_store %arg7[%c0_58, %c0_59], %100 {strides = array<i32>} : memref<10x1024xf32, #tpu.memory_space<vmem>>, vector<10x1024xf32>,
    return
  }
}

</mosaic_0001>

<llo_original>
// kernel: _mop_forward_impl.1
$region0: #{_mop_forward_impl.1}
  #allocation0 [shape = 'u32[]', space=smem, size = 0x4, offset = 0x4, fixed_abs, tag = 'smem constant byte address 0x4 - core index']
  #allocation1 [shape = 'u32[144,128]{1,0:T(1,128)}', space=vmem, size = 0x12000, scoped, tag = 'internal scratch']
  %s0 = inlined_call_operand.vmem [shape: f32[2,1024], index: 0, kind: input, shape index: {}]
  %s1 = inlined_call_operand.vmem [shape: f32[10,1024], index: 1, kind: input, shape index: {}, may-alias: {1,5}]
  %s2 = inlined_call_operand.vmem [shape: f32[1,10], index: 2, kind: input, shape index: {}, may-alias: {2,6}]
  %s3 = inlined_call_operand.vmem [shape: f32[10,1024], index: 3, kind: input, shape index: {}, may-alias: {3,7}]
  %s4 = inlined_call_operand.hbm [shape: f32[2,10], index: 4, kind: output, shape index: {0}]
  %s5 = inlined_call_operand.vmem [shape: f32[10,1024], index: 5, kind: output, shape index: {1}, may-alias: {1,5}]
  %s6 = inlined_call_operand.vmem [shape: f32[1,10], index: 6, kind: output, shape index: {2}, may-alias: {2,6}]
  %s7 = inlined_call_operand.vmem [shape: f32[10,1024], index: 7, kind: output, shape index: {3}, may-alias: {3,7}]
  %8 = xla_tuple %s4, %s5, %s6, %s7
  %s9 = sld [smem:[#allocation0]]
  $region50: #{_mop_forward_impl.1} parent=0
    _
  %s11 = ssub.s32 1, %s9
  %s12 = scalar_select 0, %s11, %s9
  $region1: #{_mop_forward_impl.1} parent=0
    #allocation2 [shape = 'u8[1024]{0}', space=vmem, size = 0x400, scoped, tag = 'output window, operand 0, single buffered']
    #allocation3 [shape = 's32[1]{0}', space=sflag, size = 0x4, scoped, tag = 'scoped memory for _mop_forward_impl.1']
    %13 = vsyncpa [#allocation3], 0
    // Predicated region
    $region2: #{_mop_forward_impl.1} parent=1 // pred_check
      _
    $region3: #{_mop_forward_impl.1} parent=1 // pred_check_branch
      %15 = sbr.rel (0) target = $region5
    $region4: #{_mop_forward_impl.1} parent=1 // pred_region
      _
    $region5: #{_mop_forward_impl.1} parent=1 // pred_fallthru
      _
    // Predicated region
    $region6: #{_mop_forward_impl.1} parent=1 // pred_check
      _
    $region7: #{_mop_forward_impl.1} parent=1 // pred_check_branch
      %17 = sbr.rel (0) target = $region9
    $region8: #{_mop_forward_impl.1} parent=1 // pred_region
      _
    $region9: #{_mop_forward_impl.1} parent=1 // pred_fallthru
      _
    // Predicated region
    $region10: #{_mop_forward_impl.1} parent=1 // pred_check
      _
    $region11: #{_mop_forward_impl.1} parent=1 // pred_check_branch
      %19 = sbr.rel (0) target = $region13
    $region12: #{_mop_forward_impl.1} parent=1 // pred_region
      _
    $region13: #{_mop_forward_impl.1} parent=1 // pred_fallthru
      _
    // Predicated region
    $region14: #{_mop_forward_impl.1} parent=1 // pred_check
      _
    $region15: #{_mop_forward_impl.1} parent=1 // pred_check_branch
      %21 = sbr.rel (0) target = $region17
    $region16: #{_mop_forward_impl.1} parent=1 // pred_region
      _
    $region17: #{_mop_forward_impl.1} parent=1 // pred_fallthru
      _
    %v22 = vld [vmem:[%s0] sm:$0xff]
    %v23 = vld [vmem:[%s0 + $0x8] sm:$0xff]
    %v24 = vld [vmem:[%s1] sm:$0xff]
    %v25 = vld [vmem:[%s1 + $0x8] sm:$0xff]
    %v26 = vld [vmem:[%s1 + $0x10] sm:$0xff]
    %v27 = vld [vmem:[%s1 + $0x18] sm:$0xff]
    %v28 = vld [vmem:[%s1 + $0x20] sm:$0xff]
    %v29 = vld [vmem:[%s1 + $0x28] sm:$0xff]
    %v30 = vld [vmem:[%s1 + $0x30] sm:$0xff]
    %v31 = vld [vmem:[%s1 + $0x38] sm:$0xff]
    %v32 = vld [vmem:[%s1 + $0x40] sm:$0x3]
    %v33 = vld [vmem:[%s1 + $0x48] sm:$0x3]
    %v34 = vld [vmem:[%s1 + $0x50] sm:$0x3]
    %v35 = vld [vmem:[%s1 + $0x58] sm:$0x3]
    %v36 = vld [vmem:[%s1 + $0x60] sm:$0x3]
    %v37 = vld [vmem:[%s1 + $0x68] sm:$0x3]
    %v38 = vld [vmem:[%s1 + $0x70] sm:$0x3]
    %v39 = vld [vmem:[%s1 + $0x78] sm:$0x3]
    %40 = vst [vmem:[%s5] sm:$0xff] %v24
    %41 = vst [vmem:[%s5 + $0x8] sm:$0xff] %v25
    %42 = vst [vmem:[%s5 + $0x10] sm:$0xff] %v26
    %43 = vst [vmem:[%s5 + $0x18] sm:$0xff] %v27
    %44 = vst [vmem:[%s5 + $0x20] sm:$0xff] %v28
    %45 = vst [vmem:[%s5 + $0x28] sm:$0xff] %v29
    %46 = vst [vmem:[%s5 + $0x30] sm:$0xff] %v30
    %47 = vst [vmem:[%s5 + $0x38] sm:$0xff] %v31
    %48 = vst [vmem:[%s5 + $0x40] sm:$0x3] %v32
    %49 = vst [vmem:[%s5 + $0x48] sm:$0x3] %v33
    %50 = vst [vmem:[%s5 + $0x50] sm:$0x3] %v34
    %51 = vst [vmem:[%s5 + $0x58] sm:$0x3] %v35
    %52 = vst [vmem:[%s5 + $0x60] sm:$0x3] %v36
    %53 = vst [vmem:[%s5 + $0x68] sm:$0x3] %v37
    %54 = vst [vmem:[%s5 + $0x70] sm:$0x3] %v38
    %55 = vst [vmem:[%s5 + $0x78] sm:$0x3] %v39
    %v56 = vld [vmem:[%s2] sm:$0x1]
    %vm57 = vcmask 73728
    %58 = vst.msk [vmem:[%s6] sm:$0x1] %vm57, %v56
    %v59 = vld [vmem:[%s3] sm:$0xff]
    %v60 = vld [vmem:[%s3 + $0x8] sm:$0xff]
    %v61 = vld [vmem:[%s3 + $0x10] sm:$0xff]
    %v62 = vld [vmem:[%s3 + $0x18] sm:$0xff]
    %v63 = vld [vmem:[%s3 + $0x20] sm:$0xff]
    %v64 = vld [vmem:[%s3 + $0x28] sm:$0xff]
    %v65 = vld [vmem:[%s3 + $0x30] sm:$0xff]
    %v66 = vld [vmem:[%s3 + $0x38] sm:$0xff]
    %v67 = vld [vmem:[%s3 + $0x40] sm:$0x3]
    %v68 = vld [vmem:[%s3 + $0x48] sm:$0x3]
    %v69 = vld [vmem:[%s3 + $0x50] sm:$0x3]
    %v70 = vld [vmem:[%s3 + $0x58] sm:$0x3]
    %v71 = vld [vmem:[%s3 + $0x60] sm:$0x3]
    %v72 = vld [vmem:[%s3 + $0x68] sm:$0x3]
    %v73 = vld [vmem:[%s3 + $0x70] sm:$0x3]
    %v74 = vld [vmem:[%s3 + $0x78] sm:$0x3]
    %75 = vst [vmem:[%s7] sm:$0xff] %v59
    %76 = vst [vmem:[%s7 + $0x8] sm:$0xff] %v60
    %77 = vst [vmem:[%s7 + $0x10] sm:$0xff] %v61
    %78 = vst [vmem:[%s7 + $0x18] sm:$0xff] %v62
    %79 = vst [vmem:[%s7 + $0x20] sm:$0xff] %v63
    %80 = vst [vmem:[%s7 + $0x28] sm:$0xff] %v64
    %81 = vst [vmem:[%s7 + $0x30] sm:$0xff] %v65
    %82 = vst [vmem:[%s7 + $0x38] sm:$0xff] %v66
    %83 = vst [vmem:[%s7 + $0x40] sm:$0x3] %v67
    %84 = vst [vmem:[%s7 + $0x48] sm:$0x3] %v68
    %85 = vst [vmem:[%s7 + $0x50] sm:$0x3] %v69
    %86 = vst [vmem:[%s7 + $0x58] sm:$0x3] %v70
    %87 = vst [vmem:[%s7 + $0x60] sm:$0x3] %v71
    %88 = vst [vmem:[%s7 + $0x68] sm:$0x3] %v72
    %89 = vst [vmem:[%s7 + $0x70] sm:$0x3] %v73
    %90 = vst [vmem:[%s7 + $0x78] sm:$0x3] %v74
    %v91 = vld [vmem:[%s5] sm:$0xff]
    %v92 = vld [vmem:[%s5 + $0x8] sm:$0xff]
    %v93 = vld [vmem:[%s5 + $0x10] sm:$0xff]
    %v94 = vld [vmem:[%s5 + $0x18] sm:$0xff]
    %v95 = vld [vmem:[%s5 + $0x20] sm:$0xff]
    %v96 = vld [vmem:[%s5 + $0x28] sm:$0xff]
    %v97 = vld [vmem:[%s5 + $0x30] sm:$0xff]
    %v98 = vld [vmem:[%s5 + $0x38] sm:$0xff]
    %v99 = vld [vmem:[%s5 + $0x40] sm:$0x3]
    %v100 = vld [vmem:[%s5 + $0x48] sm:$0x3]
    %v101 = vld [vmem:[%s5 + $0x50] sm:$0x3]
    %v102 = vld [vmem:[%s5 + $0x58] sm:$0x3]
    %v103 = vld [vmem:[%s5 + $0x60] sm:$0x3]
    %v104 = vld [vmem:[%s5 + $0x68] sm:$0x3]
    %v105 = vld [vmem:[%s5 + $0x70] sm:$0x3]
    %v106 = vld [vmem:[%s5 + $0x78] sm:$0x3]
    %v107 = vld [vmem:[%s6] sm:$0x1]
    %v108 = vld [vmem:[%s7] sm:$0xff]
    %v109 = vld [vmem:[%s7 + $0x8] sm:$0xff]
    %v110 = vld [vmem:[%s7 + $0x10] sm:$0xff]
    %v111 = vld [vmem:[%s7 + $0x18] sm:$0xff]
    %v112 = vld [vmem:[%s7 + $0x20] sm:$0xff]
    %v113 = vld [vmem:[%s7 + $0x28] sm:$0xff]
    %v114 = vld [vmem:[%s7 + $0x30] sm:$0xff]
    %v115 = vld [vmem:[%s7 + $0x38] sm:$0xff]
    %v116 = vld [vmem:[%s7 + $0x40] sm:$0x3]
    %v117 = vld [vmem:[%s7 + $0x48] sm:$0x3]
    %v118 = vld [vmem:[%s7 + $0x50] sm:$0x3]
    %v119 = vld [vmem:[%s7 + $0x58] sm:$0x3]
    %v120 = vld [vmem:[%s7 + $0x60] sm:$0x3]
    %v121 = vld [vmem:[%s7 + $0x68] sm:$0x3]
    %v122 = vld [vmem:[%s7 + $0x70] sm:$0x3]
    %v123 = vld [vmem:[%s7 + $0x78] sm:$0x3]
    %v125 = vlaneseq
    %v126 = vshrl.u32 %v125, 7
    %v127 = vsub.s32 0, %v126
    %v128 = vrot.slane %v107, %v127
    %v132 = vcombine.high %v22, %v22
    %v134 = vunpack.c.l.s4 1983009808
    %v135 = vunpack.c.0.s8 %v134
    %v136 = vlaneseq
    %v137 = vshrl.u32 %v136, 7
    %v138 = vsub.s32 %v135, %v137
    %v139 = vrot.slane %v22, %v138
    %v141 = vunpack.c.l.s4 1983009808
    %v142 = vunpack.c.0.s8 %v141
    %v143 = vlaneseq
    %v144 = vshrl.u32 %v143, 7
    %v145 = vsub.s32 %v142, %v144
    %v146 = vrot.slane %v132, %v145
    %v147 = vcombine.high %v139, %v139
    %v148 = vcombine.high %v146, %v146
    %v149 = vcombine.high %v23, %v23
    %v151 = vunpack.c.l.s4 1983009808
    %v152 = vunpack.c.0.s8 %v151
    %v153 = vlaneseq
    %v154 = vshrl.u32 %v153, 7
    %v155 = vsub.s32 %v152, %v154
    %v156 = vrot.slane %v23, %v155
    %v158 = vunpack.c.l.s4 1983009808
    %v159 = vunpack.c.0.s8 %v158
    %v160 = vlaneseq
    %v161 = vshrl.u32 %v160, 7
    %v162 = vsub.s32 %v159, %v161
    %v163 = vrot.slane %v149, %v162
    %v164 = vcombine.high %v156, %v156
    %v165 = vcombine.high %v163, %v163
    %174 = vmatprep.subr.mxu0 0.0
    %175 = vmatpush1.xpose.msra.mxu0 0.0
    %176 = vmatprep.subr.mxu0 0.0
    %177 = vmatpush1.xpose.msra.mxu0 0.0
    %178 = vmatprep.subr.mxu0 0.0
    %179 = vmatpush1.xpose.msra.mxu0 0.0
    %180 = vmatprep.subr.mxu0 0.0
    %181 = vmatpush1.xpose.msra.mxu0 0.0
    %182 = vmatprep.subr.mxu0 0.0
    %183 = vmatpush1.xpose.msra.mxu0 0.0
    %184 = vmatprep.subr.mxu0 0.0
    %185 = vmatpush1.xpose.msra.mxu0 0.0
    %186 = vmatprep.subr.mxu0 0.0
    %187 = vmatpush1.xpose.msra.mxu0 0.0
    %188 = vmatprep.subr.mxu0 0.0
    %189 = vmatpush1.xpose.msra.mxu0 0.0
    %190 = vmatprep.subr.mxu0 0.0
    %191 = vmatpush1.xpose.msra.mxu0 0.0
    %192 = vmatprep.subr.mxu0 0.0
    %193 = vmatpush1.xpose.msra.mxu0 0.0
    %194 = vmatprep.subr.mxu0 0.0
    %195 = vmatpush1.xpose.msra.mxu0 0.0
    %196 = vmatprep.subr.mxu0 0.0
    %197 = vmatpush1.xpose.msra.mxu0 0.0
    %198 = vmatprep.subr.mxu0 0.0
    %199 = vmatpush1.xpose.msra.mxu0 0.0
    %200 = vmatprep.subr.mxu0 0.0
    %201 = vmatpush1.xpose.msra.mxu0 0.0
    %202 = vmatprep.subr.mxu0 %v100
    %203 = vmatpush1.xpose.msra.mxu0 %v99
    %204 = vmatprep.subr.mxu0 %v92
    %205 = vmatpush1.xpose.msra.mxu0 %v91
    %206 = vmatprep.subr.mxu0 0.0
    %207 = vmatpush2.xpose.msra.mxu0 0.0
    %208 = vmatprep.subr.mxu0 0.0
    %209 = vmatpush2.xpose.msra.mxu0 0.0
    %210 = vmatprep.subr.mxu0 0.0
    %211 = vmatpush2.xpose.msra.mxu0 0.0
    %212 = vmatprep.subr.mxu0 0.0
    %213 = vmatpush2.xpose.msra.mxu0 0.0
    %214 = vmatprep.subr.mxu0 0.0
    %215 = vmatpush2.xpose.msra.mxu0 0.0
    %216 = vmatprep.subr.mxu0 0.0
    %217 = vmatpush2.xpose.msra.mxu0 0.0
    %218 = vmatprep.subr.mxu0 0.0
    %219 = vmatpush2.xpose.msra.mxu0 0.0
    %220 = vmatprep.subr.mxu0 0.0
    %221 = vmatpush2.xpose.msra.mxu0 0.0
    %222 = vmatprep.subr.mxu0 0.0
    %223 = vmatpush2.xpose.msra.mxu0 0.0
    %224 = vmatprep.subr.mxu0 0.0
    %225 = vmatpush2.xpose.msra.mxu0 0.0
    %226 = vmatprep.subr.mxu0 0.0
    %227 = vmatpush2.xpose.msra.mxu0 0.0
    %228 = vmatprep.subr.mxu0 0.0
    %229 = vmatpush2.xpose.msra.mxu0 0.0
    %230 = vmatprep.subr.mxu0 0.0
    %231 = vmatpush2.xpose.msra.mxu0 0.0
    %232 = vmatprep.subr.mxu0 0.0
    %233 = vmatpush2.xpose.msra.mxu0 0.0
    %234 = vmatprep.subr.mxu0 0.0
    %235 = vmatpush2.xpose.msra.mxu0 0.0
    %236 = vmatprep.subr.mxu0 0.0
    %237 = vmatpush2.xpose.msra.mxu0 0.0
    %238 = vmatprep.mubr.f32.mxu0 %v147
    %239 = vmatmul.mubr.f32.gmra.mxu0 %v139
    %v240 = vpop.f32.mrf.mxu0
    %v241 = vadd.f32 %v128, %v240
    %v242 = vpop.f32.mrf.mxu0
    %243 = vdwg.mxu0
    %244 = vmatprep.subr.mxu0 0.0
    %245 = vmatpush1.xpose.msra.mxu0 0.0
    %246 = vmatprep.subr.mxu0 0.0
    %247 = vmatpush1.xpose.msra.mxu0 0.0
    %248 = vmatprep.subr.mxu0 0.0
    %249 = vmatpush1.xpose.msra.mxu0 0.0
    %250 = vmatprep.subr.mxu0 0.0
    %251 = vmatpush1.xpose.msra.mxu0 0.0
    %252 = vmatprep.subr.mxu0 0.0
    %253 = vmatpush1.xpose.msra.mxu0 0.0
    %254 = vmatprep.subr.mxu0 0.0
    %255 = vmatpush1.xpose.msra.mxu0 0.0
    %256 = vmatprep.subr.mxu0 0.0
    %257 = vmatpush1.xpose.msra.mxu0 0.0
    %258 = vmatprep.subr.mxu0 0.0
    %259 = vmatpush1.xpose.msra.mxu0 0.0
    %260 = vmatprep.subr.mxu0 0.0
    %261 = vmatpush1.xpose.msra.mxu0 0.0
    %262 = vmatprep.subr.mxu0 0.0
    %263 = vmatpush1.xpose.msra.mxu0 0.0
    %264 = vmatprep.subr.mxu0 0.0
    %265 = vmatpush1.xpose.msra.mxu0 0.0
    %266 = vmatprep.subr.mxu0 0.0
    %267 = vmatpush1.xpose.msra.mxu0 0.0
    %268 = vmatprep.subr.mxu0 0.0
    %269 = vmatpush1.xpose.msra.mxu0 0.0
    %270 = vmatprep.subr.mxu0 0.0
    %271 = vmatpush1.xpose.msra.mxu0 0.0
    %272 = vmatprep.subr.mxu0 %v102
    %273 = vmatpush1.xpose.msra.mxu0 %v101
    %274 = vmatprep.subr.mxu0 %v94
    %275 = vmatpush1.xpose.msra.mxu0 %v93
    %276 = vmatprep.subr.mxu0 0.0
    %277 = vmatpush2.xpose.msra.mxu0 0.0
    %278 = vmatprep.subr.mxu0 0.0
    %279 = vmatpush2.xpose.msra.mxu0 0.0
    %280 = vmatprep.subr.mxu0 0.0
    %281 = vmatpush2.xpose.msra.mxu0 0.0
    %282 = vmatprep.subr.mxu0 0.0
    %283 = vmatpush2.xpose.msra.mxu0 0.0
    %284 = vmatprep.subr.mxu0 0.0
    %285 = vmatpush2.xpose.msra.mxu0 0.0
    %286 = vmatprep.subr.mxu0 0.0
    %287 = vmatpush2.xpose.msra.mxu0 0.0
    %288 = vmatprep.subr.mxu0 0.0
    %289 = vmatpush2.xpose.msra.mxu0 0.0
    %290 = vmatprep.subr.mxu0 0.0
    %291 = vmatpush2.xpose.msra.mxu0 0.0
    %292 = vmatprep.subr.mxu0 0.0
    %293 = vmatpush2.xpose.msra.mxu0 0.0
    %294 = vmatprep.subr.mxu0 0.0
    %295 = vmatpush2.xpose.msra.mxu0 0.0
    %296 = vmatprep.subr.mxu0 0.0
    %297 = vmatpush2.xpose.msra.mxu0 0.0
    %298 = vmatprep.subr.mxu0 0.0
    %299 = vmatpush2.xpose.msra.mxu0 0.0
    %300 = vmatprep.subr.mxu0 0.0
    %301 = vmatpush2.xpose.msra.mxu0 0.0
    %302 = vmatprep.subr.mxu0 0.0
    %303 = vmatpush2.xpose.msra.mxu0 0.0
    %304 = vmatprep.subr.mxu0 0.0
    %305 = vmatpush2.xpose.msra.mxu0 0.0
    %306 = vmatprep.subr.mxu0 0.0
    %307 = vmatpush2.xpose.msra.mxu0 0.0
    %308 = vmatprep.mubr.f32.mxu0 %v148
    %309 = vmatmul.mubr.f32.gmra.mxu0 %v146
    %v310 = vpop.f32.mrf.mxu0
    %v311 = vadd.f32 %v241, %v310
    %v312 = vpop.f32.mrf.mxu0
    %313 = vdwg.mxu0
    %314 = vmatprep.subr.mxu0 0.0
    %315 = vmatpush1.xpose.msra.mxu0 0.0
    %316 = vmatprep.subr.mxu0 0.0
    %317 = vmatpush1.xpose.msra.mxu0 0.0
    %318 = vmatprep.subr.mxu0 0.0
    %319 = vmatpush1.xpose.msra.mxu0 0.0
    %320 = vmatprep.subr.mxu0 0.0
    %321 = vmatpush1.xpose.msra.mxu0 0.0
    %322 = vmatprep.subr.mxu0 0.0
    %323 = vmatpush1.xpose.msra.mxu0 0.0
    %324 = vmatprep.subr.mxu0 0.0
    %325 = vmatpush1.xpose.msra.mxu0 0.0
    %326 = vmatprep.subr.mxu0 0.0
    %327 = vmatpush1.xpose.msra.mxu0 0.0
    %328 = vmatprep.subr.mxu0 0.0
    %329 = vmatpush1.xpose.msra.mxu0 0.0
    %330 = vmatprep.subr.mxu0 0.0
    %331 = vmatpush1.xpose.msra.mxu0 0.0
    %332 = vmatprep.subr.mxu0 0.0
    %333 = vmatpush1.xpose.msra.mxu0 0.0
    %334 = vmatprep.subr.mxu0 0.0
    %335 = vmatpush1.xpose.msra.mxu0 0.0
    %336 = vmatprep.subr.mxu0 0.0
    %337 = vmatpush1.xpose.msra.mxu0 0.0
    %338 = vmatprep.subr.mxu0 0.0
    %339 = vmatpush1.xpose.msra.mxu0 0.0
    %340 = vmatprep.subr.mxu0 0.0
    %341 = vmatpush1.xpose.msra.mxu0 0.0
    %342 = vmatprep.subr.mxu0 %v104
    %343 = vmatpush1.xpose.msra.mxu0 %v103
    %344 = vmatprep.subr.mxu0 %v96
    %345 = vmatpush1.xpose.msra.mxu0 %v95
    %346 = vmatprep.subr.mxu0 0.0
    %347 = vmatpush2.xpose.msra.mxu0 0.0
    %348 = vmatprep.subr.mxu0 0.0
    %349 = vmatpush2.xpose.msra.mxu0 0.0
    %350 = vmatprep.subr.mxu0 0.0
    %351 = vmatpush2.xpose.msra.mxu0 0.0
    %352 = vmatprep.subr.mxu0 0.0
    %353 = vmatpush2.xpose.msra.mxu0 0.0
    %354 = vmatprep.subr.mxu0 0.0
    %355 = vmatpush2.xpose.msra.mxu0 0.0
    %356 = vmatprep.subr.mxu0 0.0
    %357 = vmatpush2.xpose.msra.mxu0 0.0
    %358 = vmatprep.subr.mxu0 0.0
    %359 = vmatpush2.xpose.msra.mxu0 0.0
    %360 = vmatprep.subr.mxu0 0.0
    %361 = vmatpush2.xpose.msra.mxu0 0.0
    %362 = vmatprep.subr.mxu0 0.0
    %363 = vmatpush2.xpose.msra.mxu0 0.0
    %364 = vmatprep.subr.mxu0 0.0
    %365 = vmatpush2.xpose.msra.mxu0 0.0
    %366 = vmatprep.subr.mxu0 0.0
    %367 = vmatpush2.xpose.msra.mxu0 0.0
    %368 = vmatprep.subr.mxu0 0.0
    %369 = vmatpush2.xpose.msra.mxu0 0.0
    %370 = vmatprep.subr.mxu0 0.0
    %371 = vmatpush2.xpose.msra.mxu0 0.0
    %372 = vmatprep.subr.mxu0 0.0
    %373 = vmatpush2.xpose.msra.mxu0 0.0
    %374 = vmatprep.subr.mxu0 0.0
    %375 = vmatpush2.xpose.msra.mxu0 0.0
    %376 = vmatprep.subr.mxu0 0.0
    %377 = vmatpush2.xpose.msra.mxu0 0.0
    %378 = vmatprep.mubr.f32.mxu0 %v164
    %379 = vmatmul.mubr.f32.gmra.mxu0 %v156
    %v380 = vpop.f32.mrf.mxu0
    %v381 = vadd.f32 %v311, %v380
    %v382 = vpop.f32.mrf.mxu0
    %383 = vdwg.mxu0
    %384 = vmatprep.subr.mxu0 0.0
    %385 = vmatpush1.xpose.msra.mxu0 0.0
    %386 = vmatprep.subr.mxu0 0.0
    %387 = vmatpush1.xpose.msra.mxu0 0.0
    %388 = vmatprep.subr.mxu0 0.0
    %389 = vmatpush1.xpose.msra.mxu0 0.0
    %390 = vmatprep.subr.mxu0 0.0
    %391 = vmatpush1.xpose.msra.mxu0 0.0
    %392 = vmatprep.subr.mxu0 0.0
    %393 = vmatpush1.xpose.msra.mxu0 0.0
    %394 = vmatprep.subr.mxu0 0.0
    %395 = vmatpush1.xpose.msra.mxu0 0.0
    %396 = vmatprep.subr.mxu0 0.0
    %397 = vmatpush1.xpose.msra.mxu0 0.0
    %398 = vmatprep.subr.mxu0 0.0
    %399 = vmatpush1.xpose.msra.mxu0 0.0
    %400 = vmatprep.subr.mxu0 0.0
    %401 = vmatpush1.xpose.msra.mxu0 0.0
    %402 = vmatprep.subr.mxu0 0.0
    %403 = vmatpush1.xpose.msra.mxu0 0.0
    %404 = vmatprep.subr.mxu0 0.0
    %405 = vmatpush1.xpose.msra.mxu0 0.0
    %406 = vmatprep.subr.mxu0 0.0
    %407 = vmatpush1.xpose.msra.mxu0 0.0
    %408 = vmatprep.subr.mxu0 0.0
    %409 = vmatpush1.xpose.msra.mxu0 0.0
    %410 = vmatprep.subr.mxu0 0.0
    %411 = vmatpush1.xpose.msra.mxu0 0.0
    %412 = vmatprep.subr.mxu0 %v106
    %413 = vmatpush1.xpose.msra.mxu0 %v105
    %414 = vmatprep.subr.mxu0 %v98
    %415 = vmatpush1.xpose.msra.mxu0 %v97
    %416 = vmatprep.subr.mxu0 0.0
    %417 = vmatpush2.xpose.msra.mxu0 0.0
    %418 = vmatprep.subr.mxu0 0.0
    %419 = vmatpush2.xpose.msra.mxu0 0.0
    %420 = vmatprep.subr.mxu0 0.0
    %421 = vmatpush2.xpose.msra.mxu0 0.0
    %422 = vmatprep.subr.mxu0 0.0
    %423 = vmatpush2.xpose.msra.mxu0 0.0
    %424 = vmatprep.subr.mxu0 0.0
    %425 = vmatpush2.xpose.msra.mxu0 0.0
    %426 = vmatprep.subr.mxu0 0.0
    %427 = vmatpush2.xpose.msra.mxu0 0.0
    %428 = vmatprep.subr.mxu0 0.0
    %429 = vmatpush2.xpose.msra.mxu0 0.0
    %430 = vmatprep.subr.mxu0 0.0
    %431 = vmatpush2.xpose.msra.mxu0 0.0
    %432 = vmatprep.subr.mxu0 0.0
    %433 = vmatpush2.xpose.msra.mxu0 0.0
    %434 = vmatprep.subr.mxu0 0.0
    %435 = vmatpush2.xpose.msra.mxu0 0.0
    %436 = vmatprep.subr.mxu0 0.0
    %437 = vmatpush2.xpose.msra.mxu0 0.0
    %438 = vmatprep.subr.mxu0 0.0
    %439 = vmatpush2.xpose.msra.mxu0 0.0
    %440 = vmatprep.subr.mxu0 0.0
    %441 = vmatpush2.xpose.msra.mxu0 0.0
    %442 = vmatprep.subr.mxu0 0.0
    %443 = vmatpush2.xpose.msra.mxu0 0.0
    %444 = vmatprep.subr.mxu0 0.0
    %445 = vmatpush2.xpose.msra.mxu0 0.0
    %446 = vmatprep.subr.mxu0 0.0
    %447 = vmatpush2.xpose.msra.mxu0 0.0
    %448 = vmatprep.mubr.f32.mxu0 %v165
    %449 = vmatmul.mubr.f32.gmra.mxu0 %v163
    %v450 = vpop.f32.mrf.mxu0
    %v451 = vadd.f32 %v381, %v450
    %v452 = vpop.f32.mrf.mxu0
    %453 = vdwg.mxu0
    %vm454 = vcmask 74752
    %v455 = vsel %vm454, %v451, -inf
    %456 = vmax.xlane.f32.xlu0 %v455
    %v457 = vpop.xlane.xlu0 %456
    %v458 = vsub.f32 %v451, %v457
    %v459 = vmul.f32 %v458, 1.442695
    %v460 = vpow.pop %v459
    %v461 = vsel %vm454, %v460, 0.0
    %462 = vadd.xlane.f32.xlu0 %v461
    %v463 = vpop.xlane.xlu0 %462
    %v464 = vrcp.pop %v463
    %v465 = vmul.f32 %v460, %v464
    %v466 = vlog2.pop %v463
    %v467 = vmul.f32 %v466, 0.6931472
    %v468 = vsub.f32 %v458, %v467
    %v469 = vmul.f32 %v465, %v468
    %v470 = vsel %vm454, %v469, 0.0
    %471 = vadd.xlane.f32.xlu0 %v470
    %v472 = vpop.xlane.xlu0 %471
    %v473 = vsub.f32 0.0, %v472
    %v474 = vsub.f32 0.0, %v465
    %v475 = vadd.f32 %v468, %v473
    %v476 = vmul.f32 %v474, %v475
    %v477 = vmul.f32 %v476, 0.0005
    %478 = vxpose.xlu0.b32.start [1/16] %v477, 128
    %479 = vxpose.xlu0.b32.cont [2/16] 0.0, 128
    %480 = vxpose.xlu0.b32.cont [3/16] 0.0, 128
    %481 = vxpose.xlu0.b32.cont [4/16] 0.0, 128
    %482 = vxpose.xlu0.b32.cont [5/16] 0.0, 128
    %483 = vxpose.xlu0.b32.cont [6/16] 0.0, 128
    %484 = vxpose.xlu0.b32.cont [7/16] 0.0, 128
    %485 = vxpose.xlu0.b32.cont [8/16] 0.0, 128
    %486 = vxpose.xlu0.b32.cont [9/16] 0.0, 128
    %487 = vxpose.xlu0.b32.cont [10/16] 0.0, 128
    %488 = vxpose.xlu0.b32.cont [11/16] 0.0, 128
    %489 = vxpose.xlu0.b32.cont [12/16] 0.0, 128
    %490 = vxpose.xlu0.b32.cont [13/16] 0.0, 128
    %491 = vxpose.xlu0.b32.cont [14/16] 0.0, 128
    %492 = vxpose.xlu0.b32.cont [15/16] 0.0, 128
    %493 = vxpose.xlu0.b32.end [16/16] 0.0, 128
    %v494 = vpop.trf.xlu0
    %v495 = vpop.trf.xlu0
    %v496 = vpop.trf.xlu0
    %v497 = vpop.trf.xlu0
    %v498 = vpop.trf.xlu0
    %v499 = vpop.trf.xlu0
    %v500 = vpop.trf.xlu0
    %v501 = vpop.trf.xlu0
    %v502 = vpop.trf.xlu0
    %v503 = vpop.trf.xlu0
    %v504 = vpop.trf.xlu0
    %v505 = vpop.trf.xlu0
    %v506 = vpop.trf.xlu0
    %v507 = vpop.trf.xlu0
    %v508 = vpop.trf.xlu0
    %v509 = vpop.trf.xlu0
    %vm510 = vcmask 15360
    %v512 = vsel %vm510, %v494, 0
    %v515 = vsel %vm510, %v495, 0
    %vm517 = vcmask 1041408
    %v518 = vsel %vm517, %v139, 0
    %v520 = vsel %vm517, %v147, 0
    %v522 = vsel %vm517, %v146, 0
    %v524 = vsel %vm517, %v148, 0
    %v526 = vsel %vm517, %v156, 0
    %v528 = vsel %vm517, %v164, 0
    %v530 = vsel %vm517, %v163, 0
    %v532 = vsel %vm517, %v165, 0
    %534 = vmatprep.subr.mxu0 0.0
    %535 = vmatpush1.msra.mxu0 0.0
    %536 = vmatprep.subr.mxu0 0.0
    %537 = vmatpush1.msra.mxu0 0.0
    %538 = vmatprep.subr.mxu0 0.0
    %539 = vmatpush1.msra.mxu0 0.0
    %540 = vmatprep.subr.mxu0 0.0
    %541 = vmatpush1.msra.mxu0 0.0
    %542 = vmatprep.subr.mxu0 0.0
    %543 = vmatpush1.msra.mxu0 0.0
    %544 = vmatprep.subr.mxu0 0.0
    %545 = vmatpush1.msra.mxu0 0.0
    %546 = vmatprep.subr.mxu0 0.0
    %547 = vmatpush1.msra.mxu0 0.0
    %548 = vmatprep.subr.mxu0 0.0
    %549 = vmatpush1.msra.mxu0 0.0
    %550 = vmatprep.subr.mxu0 0.0
    %551 = vmatpush1.msra.mxu0 0.0
    %552 = vmatprep.subr.mxu0 0.0
    %553 = vmatpush1.msra.mxu0 0.0
    %554 = vmatprep.subr.mxu0 0.0
    %555 = vmatpush1.msra.mxu0 0.0
    %556 = vmatprep.subr.mxu0 0.0
    %557 = vmatpush1.msra.mxu0 0.0
    %558 = vmatprep.subr.mxu0 0.0
    %559 = vmatpush1.msra.mxu0 0.0
    %560 = vmatprep.subr.mxu0 0.0
    %561 = vmatpush1.msra.mxu0 0.0
    %562 = vmatprep.subr.mxu0 0.0
    %563 = vmatpush1.msra.mxu0 0.0
    %564 = vmatprep.subr.mxu0 %v520
    %565 = vmatpush1.msra.mxu0 %v518
    %566 = vmatprep.subr.mxu0 0.0
    %567 = vmatpush2.msra.mxu0 0.0
    %568 = vmatprep.subr.mxu0 0.0
    %569 = vmatpush2.msra.mxu0 0.0
    %570 = vmatprep.subr.mxu0 0.0
    %571 = vmatpush2.msra.mxu0 0.0
    %572 = vmatprep.subr.mxu0 0.0
    %573 = vmatpush2.msra.mxu0 0.0
    %574 = vmatprep.subr.mxu0 0.0
    %575 = vmatpush2.msra.mxu0 0.0
    %576 = vmatprep.subr.mxu0 0.0
    %577 = vmatpush2.msra.mxu0 0.0
    %578 = vmatprep.subr.mxu0 0.0
    %579 = vmatpush2.msra.mxu0 0.0
    %580 = vmatprep.subr.mxu0 0.0
    %581 = vmatpush2.msra.mxu0 0.0
    %582 = vmatprep.subr.mxu0 0.0
    %583 = vmatpush2.msra.mxu0 0.0
    %584 = vmatprep.subr.mxu0 0.0
    %585 = vmatpush2.msra.mxu0 0.0
    %586 = vmatprep.subr.mxu0 0.0
    %587 = vmatpush2.msra.mxu0 0.0
    %588 = vmatprep.subr.mxu0 0.0
    %589 = vmatpush2.msra.mxu0 0.0
    %590 = vmatprep.subr.mxu0 0.0
    %591 = vmatpush2.msra.mxu0 0.0
    %592 = vmatprep.subr.mxu0 0.0
    %593 = vmatpush2.msra.mxu0 0.0
    %594 = vmatprep.subr.mxu0 0.0
    %595 = vmatpush2.msra.mxu0 0.0
    %596 = vmatprep.subr.mxu0 0.0
    %597 = vmatpush2.msra.mxu0 0.0
    %598 = vmatprep.mubr.f32.mxu0 0.0
    %599 = vmatmul.mubr.f32.gmra.mxu0 %v512
    %v600 = vpop.f32.mrf.mxu0
    %v601 = vadd.f32 0.0, %v600
    %v602 = vpop.f32.mrf.mxu0
    %v603 = vadd.f32 0.0, %v602
    %604 = vmatprep.mubr.f32.mxu0 0.0
    %605 = vmatmul.mubr.f32.gmra.mxu0 %v515
    %v606 = vpop.f32.mrf.mxu0
    %v607 = vadd.f32 0.0, %v606
    %v608 = vpop.f32.mrf.mxu0
    %v609 = vadd.f32 0.0, %v608
    %610 = vdwg.mxu0
    %611 = vmatprep.subr.mxu0 0.0
    %612 = vmatpush1.msra.mxu0 0.0
    %613 = vmatprep.subr.mxu0 0.0
    %614 = vmatpush1.msra.mxu0 0.0
    %615 = vmatprep.subr.mxu0 0.0
    %616 = vmatpush1.msra.mxu0 0.0
    %617 = vmatprep.subr.mxu0 0.0
    %618 = vmatpush1.msra.mxu0 0.0
    %619 = vmatprep.subr.mxu0 0.0
    %620 = vmatpush1.msra.mxu0 0.0
    %621 = vmatprep.subr.mxu0 0.0
    %622 = vmatpush1.msra.mxu0 0.0
    %623 = vmatprep.subr.mxu0 0.0
    %624 = vmatpush1.msra.mxu0 0.0
    %625 = vmatprep.subr.mxu0 0.0
    %626 = vmatpush1.msra.mxu0 0.0
    %627 = vmatprep.subr.mxu0 0.0
    %628 = vmatpush1.msra.mxu0 0.0
    %629 = vmatprep.subr.mxu0 0.0
    %630 = vmatpush1.msra.mxu0 0.0
    %631 = vmatprep.subr.mxu0 0.0
    %632 = vmatpush1.msra.mxu0 0.0
    %633 = vmatprep.subr.mxu0 0.0
    %634 = vmatpush1.msra.mxu0 0.0
    %635 = vmatprep.subr.mxu0 0.0
    %636 = vmatpush1.msra.mxu0 0.0
    %637 = vmatprep.subr.mxu0 0.0
    %638 = vmatpush1.msra.mxu0 0.0
    %639 = vmatprep.subr.mxu0 0.0
    %640 = vmatpush1.msra.mxu0 0.0
    %641 = vmatprep.subr.mxu0 %v524
    %642 = vmatpush1.msra.mxu0 %v522
    %643 = vmatprep.subr.mxu0 0.0
    %644 = vmatpush2.msra.mxu0 0.0
    %645 = vmatprep.subr.mxu0 0.0
    %646 = vmatpush2.msra.mxu0 0.0
    %647 = vmatprep.subr.mxu0 0.0
    %648 = vmatpush2.msra.mxu0 0.0
    %649 = vmatprep.subr.mxu0 0.0
    %650 = vmatpush2.msra.mxu0 0.0
    %651 = vmatprep.subr.mxu0 0.0
    %652 = vmatpush2.msra.mxu0 0.0
    %653 = vmatprep.subr.mxu0 0.0
    %654 = vmatpush2.msra.mxu0 0.0
    %655 = vmatprep.subr.mxu0 0.0
    %656 = vmatpush2.msra.mxu0 0.0
    %657 = vmatprep.subr.mxu0 0.0
    %658 = vmatpush2.msra.mxu0 0.0
    %659 = vmatprep.subr.mxu0 0.0
    %660 = vmatpush2.msra.mxu0 0.0
    %661 = vmatprep.subr.mxu0 0.0
    %662 = vmatpush2.msra.mxu0 0.0
    %663 = vmatprep.subr.mxu0 0.0
    %664 = vmatpush2.msra.mxu0 0.0
    %665 = vmatprep.subr.mxu0 0.0
    %666 = vmatpush2.msra.mxu0 0.0
    %667 = vmatprep.subr.mxu0 0.0
    %668 = vmatpush2.msra.mxu0 0.0
    %669 = vmatprep.subr.mxu0 0.0
    %670 = vmatpush2.msra.mxu0 0.0
    %671 = vmatprep.subr.mxu0 0.0
    %672 = vmatpush2.msra.mxu0 0.0
    %673 = vmatprep.subr.mxu0 0.0
    %674 = vmatpush2.msra.mxu0 0.0
    %675 = vmatprep.mubr.f32.mxu0 0.0
    %676 = vmatmul.mubr.f32.gmra.mxu0 %v512
    %v677 = vpop.f32.mrf.mxu0
    %v678 = vadd.f32 0.0, %v677
    %v679 = vpop.f32.mrf.mxu0
    %v680 = vadd.f32 0.0, %v679
    %681 = vmatprep.mubr.f32.mxu0 0.0
    %682 = vmatmul.mubr.f32.gmra.mxu0 %v515
    %v683 = vpop.f32.mrf.mxu0
    %v684 = vadd.f32 0.0, %v683
    %v685 = vpop.f32.mrf.mxu0
    %v686 = vadd.f32 0.0, %v685
    %687 = vdwg.mxu0
    %688 = vmatprep.subr.mxu0 0.0
    %689 = vmatpush1.msra.mxu0 0.0
    %690 = vmatprep.subr.mxu0 0.0
    %691 = vmatpush1.msra.mxu0 0.0
    %692 = vmatprep.subr.mxu0 0.0
    %693 = vmatpush1.msra.mxu0 0.0
    %694 = vmatprep.subr.mxu0 0.0
    %695 = vmatpush1.msra.mxu0 0.0
    %696 = vmatprep.subr.mxu0 0.0
    %697 = vmatpush1.msra.mxu0 0.0
    %698 = vmatprep.subr.mxu0 0.0
    %699 = vmatpush1.msra.mxu0 0.0
    %700 = vmatprep.subr.mxu0 0.0
    %701 = vmatpush1.msra.mxu0 0.0
    %702 = vmatprep.subr.mxu0 0.0
    %703 = vmatpush1.msra.mxu0 0.0
    %704 = vmatprep.subr.mxu0 0.0
    %705 = vmatpush1.msra.mxu0 0.0
    %706 = vmatprep.subr.mxu0 0.0
    %707 = vmatpush1.msra.mxu0 0.0
    %708 = vmatprep.subr.mxu0 0.0
    %709 = vmatpush1.msra.mxu0 0.0
    %710 = vmatprep.subr.mxu0 0.0
    %711 = vmatpush1.msra.mxu0 0.0
    %712 = vmatprep.subr.mxu0 0.0
    %713 = vmatpush1.msra.mxu0 0.0
    %714 = vmatprep.subr.mxu0 0.0
    %715 = vmatpush1.msra.mxu0 0.0
    %716 = vmatprep.subr.mxu0 0.0
    %717 = vmatpush1.msra.mxu0 0.0
    %718 = vmatprep.subr.mxu0 %v528
    %719 = vmatpush1.msra.mxu0 %v526
    %720 = vmatprep.subr.mxu0 0.0
    %721 = vmatpush2.msra.mxu0 0.0
    %722 = vmatprep.subr.mxu0 0.0
    %723 = vmatpush2.msra.mxu0 0.0
    %724 = vmatprep.subr.mxu0 0.0
    %725 = vmatpush2.msra.mxu0 0.0
    %726 = vmatprep.subr.mxu0 0.0
    %727 = vmatpush2.msra.mxu0 0.0
    %728 = vmatprep.subr.mxu0 0.0
    %729 = vmatpush2.msra.mxu0 0.0
    %730 = vmatprep.subr.mxu0 0.0
    %731 = vmatpush2.msra.mxu0 0.0
    %732 = vmatprep.subr.mxu0 0.0
    %733 = vmatpush2.msra.mxu0 0.0
    %734 = vmatprep.subr.mxu0 0.0
    %735 = vmatpush2.msra.mxu0 0.0
    %736 = vmatprep.subr.mxu0 0.0
    %737 = vmatpush2.msra.mxu0 0.0
    %738 = vmatprep.subr.mxu0 0.0
    %739 = vmatpush2.msra.mxu0 0.0
    %740 = vmatprep.subr.mxu0 0.0
    %741 = vmatpush2.msra.mxu0 0.0
    %742 = vmatprep.subr.mxu0 0.0
    %743 = vmatpush2.msra.mxu0 0.0
    %744 = vmatprep.subr.mxu0 0.0
    %745 = vmatpush2.msra.mxu0 0.0
    %746 = vmatprep.subr.mxu0 0.0
    %747 = vmatpush2.msra.mxu0 0.0
    %748 = vmatprep.subr.mxu0 0.0
    %749 = vmatpush2.msra.mxu0 0.0
    %750 = vmatprep.subr.mxu0 0.0
    %751 = vmatpush2.msra.mxu0 0.0
    %752 = vmatprep.mubr.f32.mxu0 0.0
    %753 = vmatmul.mubr.f32.gmra.mxu0 %v512
    %v754 = vpop.f32.mrf.mxu0
    %v755 = vadd.f32 0.0, %v754
    %v756 = vpop.f32.mrf.mxu0
    %v757 = vadd.f32 0.0, %v756
    %758 = vmatprep.mubr.f32.mxu0 0.0
    %759 = vmatmul.mubr.f32.gmra.mxu0 %v515
    %v760 = vpop.f32.mrf.mxu0
    %v761 = vadd.f32 0.0, %v760
    %v762 = vpop.f32.mrf.mxu0
    %v763 = vadd.f32 0.0, %v762
    %764 = vdwg.mxu0
    %765 = vmatprep.subr.mxu0 0.0
    %766 = vmatpush1.msra.mxu0 0.0
    %767 = vmatprep.subr.mxu0 0.0
    %768 = vmatpush1.msra.mxu0 0.0
    %769 = vmatprep.subr.mxu0 0.0
    %770 = vmatpush1.msra.mxu0 0.0
    %771 = vmatprep.subr.mxu0 0.0
    %772 = vmatpush1.msra.mxu0 0.0
    %773 = vmatprep.subr.mxu0 0.0
    %774 = vmatpush1.msra.mxu0 0.0
    %775 = vmatprep.subr.mxu0 0.0
    %776 = vmatpush1.msra.mxu0 0.0
    %777 = vmatprep.subr.mxu0 0.0
    %778 = vmatpush1.msra.mxu0 0.0
    %779 = vmatprep.subr.mxu0 0.0
    %780 = vmatpush1.msra.mxu0 0.0
    %781 = vmatprep.subr.mxu0 0.0
    %782 = vmatpush1.msra.mxu0 0.0
    %783 = vmatprep.subr.mxu0 0.0
    %784 = vmatpush1.msra.mxu0 0.0
    %785 = vmatprep.subr.mxu0 0.0
    %786 = vmatpush1.msra.mxu0 0.0
    %787 = vmatprep.subr.mxu0 0.0
    %788 = vmatpush1.msra.mxu0 0.0
    %789 = vmatprep.subr.mxu0 0.0
    %790 = vmatpush1.msra.mxu0 0.0
    %791 = vmatprep.subr.mxu0 0.0
    %792 = vmatpush1.msra.mxu0 0.0
    %793 = vmatprep.subr.mxu0 0.0
    %794 = vmatpush1.msra.mxu0 0.0
    %795 = vmatprep.subr.mxu0 %v532
    %796 = vmatpush1.msra.mxu0 %v530
    %797 = vmatprep.subr.mxu0 0.0
    %798 = vmatpush2.msra.mxu0 0.0
    %799 = vmatprep.subr.mxu0 0.0
    %800 = vmatpush2.msra.mxu0 0.0
    %801 = vmatprep.subr.mxu0 0.0
    %802 = vmatpush2.msra.mxu0 0.0
    %803 = vmatprep.subr.mxu0 0.0
    %804 = vmatpush2.msra.mxu0 0.0
    %805 = vmatprep.subr.mxu0 0.0
    %806 = vmatpush2.msra.mxu0 0.0
    %807 = vmatprep.subr.mxu0 0.0
    %808 = vmatpush2.msra.mxu0 0.0
    %809 = vmatprep.subr.mxu0 0.0
    %810 = vmatpush2.msra.mxu0 0.0
    %811 = vmatprep.subr.mxu0 0.0
    %812 = vmatpush2.msra.mxu0 0.0
    %813 = vmatprep.subr.mxu0 0.0
    %814 = vmatpush2.msra.mxu0 0.0
    %815 = vmatprep.subr.mxu0 0.0
    %816 = vmatpush2.msra.mxu0 0.0
    %817 = vmatprep.subr.mxu0 0.0
    %818 = vmatpush2.msra.mxu0 0.0
    %819 = vmatprep.subr.mxu0 0.0
    %820 = vmatpush2.msra.mxu0 0.0
    %821 = vmatprep.subr.mxu0 0.0
    %822 = vmatpush2.msra.mxu0 0.0
    %823 = vmatprep.subr.mxu0 0.0
    %824 = vmatpush2.msra.mxu0 0.0
    %825 = vmatprep.subr.mxu0 0.0
    %826 = vmatpush2.msra.mxu0 0.0
    %827 = vmatprep.subr.mxu0 0.0
    %828 = vmatpush2.msra.mxu0 0.0
    %829 = vmatprep.mubr.f32.mxu0 0.0
    %830 = vmatmul.mubr.f32.gmra.mxu0 %v512
    %v831 = vpop.f32.mrf.mxu0
    %v832 = vadd.f32 0.0, %v831
    %v833 = vpop.f32.mrf.mxu0
    %v834 = vadd.f32 0.0, %v833
    %835 = vmatprep.mubr.f32.mxu0 0.0
    %836 = vmatmul.mubr.f32.gmra.mxu0 %v515
    %v837 = vpop.f32.mrf.mxu0
    %v838 = vadd.f32 0.0, %v837
    %v839 = vpop.f32.mrf.mxu0
    %v840 = vadd.f32 0.0, %v839
    %841 = vdwg.mxu0
    %v842 = vsel %vm454, %v477, 0.0
    %v843 = vrot.slane %v842, 4
    %v844 = vadd.f32 %v842, %v843
    %v845 = vrot.slane %v844, 2
    %v846 = vadd.f32 %v844, %v845
    %v847 = vrot.slane %v846, 1
    %v848 = vadd.f32 %v846, %v847
    %v849 = vsub.f32 %v91, %v601
    %v850 = vsub.f32 %v92, %v603
    %v851 = vsub.f32 %v93, %v678
    %v852 = vsub.f32 %v94, %v680
    %v853 = vsub.f32 %v95, %v755
    %v854 = vsub.f32 %v96, %v757
    %v855 = vsub.f32 %v97, %v832
    %v856 = vsub.f32 %v98, %v834
    %v857 = vsub.f32 %v99, %v607
    %v858 = vsub.f32 %v100, %v609
    %v859 = vsub.f32 %v101, %v684
    %v860 = vsub.f32 %v102, %v686
    %v861 = vsub.f32 %v103, %v761
    %v862 = vsub.f32 %v104, %v763
    %v863 = vsub.f32 %v105, %v838
    %v864 = vsub.f32 %v106, %v840
    %865 = vst [vmem:[%s5] sm:$0xff] %v849
    %866 = vst [vmem:[%s5 + $0x8] sm:$0xff] %v850
    %867 = vst [vmem:[%s5 + $0x10] sm:$0xff] %v851
    %868 = vst [vmem:[%s5 + $0x18] sm:$0xff] %v852
    %869 = vst [vmem:[%s5 + $0x20] sm:$0xff] %v853
    %870 = vst [vmem:[%s5 + $0x28] sm:$0xff] %v854
    %871 = vst [vmem:[%s5 + $0x30] sm:$0xff] %v855
    %872 = vst [vmem:[%s5 + $0x38] sm:$0xff] %v856
    %873 = vst [vmem:[%s5 + $0x40] sm:$0x3] %v857
    %874 = vst [vmem:[%s5 + $0x48] sm:$0x3] %v858
    %875 = vst [vmem:[%s5 + $0x50] sm:$0x3] %v859
    %876 = vst [vmem:[%s5 + $0x58] sm:$0x3] %v860
    %877 = vst [vmem:[%s5 + $0x60] sm:$0x3] %v861
    %878 = vst [vmem:[%s5 + $0x68] sm:$0x3] %v862
    %879 = vst [vmem:[%s5 + $0x70] sm:$0x3] %v863
    %880 = vst [vmem:[%s5 + $0x78] sm:$0x3] %v864
    %v881 = vsub.f32 %v107, %v848
    %882 = vst.msk [vmem:[%s6] sm:$0x1] %vm57, %v881
    %v883 = vadd.f32 %v108, 4.8828124e-08
    %v884 = vadd.f32 %v109, 4.8828124e-08
    %v885 = vadd.f32 %v110, 4.8828124e-08
    %v886 = vadd.f32 %v111, 4.8828124e-08
    %v887 = vadd.f32 %v112, 4.8828124e-08
    %v888 = vadd.f32 %v113, 4.8828124e-08
    %v889 = vadd.f32 %v114, 4.8828124e-08
    %v890 = vadd.f32 %v115, 4.8828124e-08
    %v891 = vadd.f32 %v116, 4.8828124e-08
    %v892 = vadd.f32 %v117, 4.8828124e-08
    %v893 = vadd.f32 %v118, 4.8828124e-08
    %v894 = vadd.f32 %v119, 4.8828124e-08
    %v895 = vadd.f32 %v120, 4.8828124e-08
    %v896 = vadd.f32 %v121, 4.8828124e-08
    %v897 = vadd.f32 %v122, 4.8828124e-08
    %v898 = vadd.f32 %v123, 4.8828124e-08
    %v899 = vmul.f32 %v108, 1.442695
    %v900 = vpow.pop %v899
    %v901 = vmul.f32 %v109, 1.442695
    %v902 = vpow.pop %v901
    %v903 = vmul.f32 %v110, 1.442695
    %v904 = vpow.pop %v903
    %v905 = vmul.f32 %v111, 1.442695
    %v906 = vpow.pop %v905
    %v907 = vmul.f32 %v112, 1.442695
    %v908 = vpow.pop %v907
    %v909 = vmul.f32 %v113, 1.442695
    %v910 = vpow.pop %v909
    %v911 = vmul.f32 %v114, 1.442695
    %v912 = vpow.pop %v911
    %v913 = vmul.f32 %v115, 1.442695
    %v914 = vpow.pop %v913
    %v915 = vmul.f32 %v116, 1.442695
    %v916 = vpow.pop %v915
    %v917 = vmul.f32 %v117, 1.442695
    %v918 = vpow.pop %v917
    %v919 = vmul.f32 %v118, 1.442695
    %v920 = vpow.pop %v919
    %v921 = vmul.f32 %v119, 1.442695
    %v922 = vpow.pop %v921
    %v923 = vmul.f32 %v120, 1.442695
    %v924 = vpow.pop %v923
    %v925 = vmul.f32 %v121, 1.442695
    %v926 = vpow.pop %v925
    %v927 = vmul.f32 %v122, 1.442695
    %v928 = vpow.pop %v927
    %v929 = vmul.f32 %v123, 1.442695
    %v930 = vpow.pop %v929
    %v931 = vmul.f32 %v900, 4.882813e-07
    %v932 = vmul.f32 %v902, 4.882813e-07
    %v933 = vmul.f32 %v904, 4.882813e-07
    %v934 = vmul.f32 %v906, 4.882813e-07
    %v935 = vmul.f32 %v908, 4.882813e-07
    %v936 = vmul.f32 %v910, 4.882813e-07
    %v937 = vmul.f32 %v912, 4.882813e-07
    %v938 = vmul.f32 %v914, 4.882813e-07
    %v939 = vmul.f32 %v916, 4.882813e-07
    %v940 = vmul.f32 %v918, 4.882813e-07
    %v941 = vmul.f32 %v920, 4.882813e-07
    %v942 = vmul.f32 %v922, 4.882813e-07
    %v943 = vmul.f32 %v924, 4.882813e-07
    %v944 = vmul.f32 %v926, 4.882813e-07
    %v945 = vmul.f32 %v928, 4.882813e-07
    %v946 = vmul.f32 %v930, 4.882813e-07
    %v947 = vsub.f32 %v883, %v931
    %v948 = vsub.f32 %v884, %v932
    %v949 = vsub.f32 %v885, %v933
    %v950 = vsub.f32 %v886, %v934
    %v951 = vsub.f32 %v887, %v935
    %v952 = vsub.f32 %v888, %v936
    %v953 = vsub.f32 %v889, %v937
    %v954 = vsub.f32 %v890, %v938
    %v955 = vsub.f32 %v891, %v939
    %v956 = vsub.f32 %v892, %v940
    %v957 = vsub.f32 %v893, %v941
    %v958 = vsub.f32 %v894, %v942
    %v959 = vsub.f32 %v895, %v943
    %v960 = vsub.f32 %v896, %v944
    %v961 = vsub.f32 %v897, %v945
    %v962 = vsub.f32 %v898, %v946
    %963 = vst [vmem:[%s7] sm:$0xff] %v947
    %964 = vst [vmem:[%s7 + $0x8] sm:$0xff] %v948
    %965 = vst [vmem:[%s7 + $0x10] sm:$0xff] %v949
    %966 = vst [vmem:[%s7 + $0x18] sm:$0xff] %v950
    %967 = vst [vmem:[%s7 + $0x20] sm:$0xff] %v951
    %968 = vst [vmem:[%s7 + $0x28] sm:$0xff] %v952
    %969 = vst [vmem:[%s7 + $0x30] sm:$0xff] %v953
    %970 = vst [vmem:[%s7 + $0x38] sm:$0xff] %v954
    %971 = vst [vmem:[%s7 + $0x40] sm:$0x3] %v955
    %972 = vst [vmem:[%s7 + $0x48] sm:$0x3] %v956
    %973 = vst [vmem:[%s7 + $0x50] sm:$0x3] %v957
    %974 = vst [vmem:[%s7 + $0x58] sm:$0x3] %v958
    %975 = vst [vmem:[%s7 + $0x60] sm:$0x3] %v959
    %976 = vst [vmem:[%s7 + $0x68] sm:$0x3] %v960
    %977 = vst [vmem:[%s7 + $0x70] sm:$0x3] %v961
    %978 = vst [vmem:[%s7 + $0x78] sm:$0x3] %v962
    %v979 = vld [vmem:[%s5] sm:$0xff]
    %v980 = vld [vmem:[%s5 + $0x8] sm:$0xff]
    %v981 = vld [vmem:[%s5 + $0x10] sm:$0xff]
    %v982 = vld [vmem:[%s5 + $0x18] sm:$0xff]
    %v983 = vld [vmem:[%s5 + $0x20] sm:$0xff]
    %v984 = vld [vmem:[%s5 + $0x28] sm:$0xff]
    %v985 = vld [vmem:[%s5 + $0x30] sm:$0xff]
    %v986 = vld [vmem:[%s5 + $0x38] sm:$0xff]
    %v987 = vld [vmem:[%s5 + $0x40] sm:$0x3]
    %v988 = vld [vmem:[%s5 + $0x48] sm:$0x3]
    %v989 = vld [vmem:[%s5 + $0x50] sm:$0x3]
    %v990 = vld [vmem:[%s5 + $0x58] sm:$0x3]
    %v991 = vld [vmem:[%s5 + $0x60] sm:$0x3]
    %v992 = vld [vmem:[%s5 + $0x68] sm:$0x3]
    %v993 = vld [vmem:[%s5 + $0x70] sm:$0x3]
    %v994 = vld [vmem:[%s5 + $0x78] sm:$0x3]
    %v995 = vld [vmem:[%s6] sm:$0x1]
    %v996 = vld [vmem:[%s7] sm:$0xff]
    %v997 = vld [vmem:[%s7 + $0x8] sm:$0xff]
    %v998 = vld [vmem:[%s7 + $0x10] sm:$0xff]
    %v999 = vld [vmem:[%s7 + $0x18] sm:$0xff]
    %v1000 = vld [vmem:[%s7 + $0x20] sm:$0xff]
    %v1001 = vld [vmem:[%s7 + $0x28] sm:$0xff]
    %v1002 = vld [vmem:[%s7 + $0x30] sm:$0xff]
    %v1003 = vld [vmem:[%s7 + $0x38] sm:$0xff]
    %v1004 = vld [vmem:[%s7 + $0x40] sm:$0x3]
    %v1005 = vld [vmem:[%s7 + $0x48] sm:$0x3]
    %v1006 = vld [vmem:[%s7 + $0x50] sm:$0x3]
    %v1007 = vld [vmem:[%s7 + $0x58] sm:$0x3]
    %v1008 = vld [vmem:[%s7 + $0x60] sm:$0x3]
    %v1009 = vld [vmem:[%s7 + $0x68] sm:$0x3]
    %v1010 = vld [vmem:[%s7 + $0x70] sm:$0x3]
    %v1011 = vld [vmem:[%s7 + $0x78] sm:$0x3]
    %v1013 = vlaneseq
    %v1014 = vshrl.u32 %v1013, 7
    %v1015 = vsub.s32 0, %v1014
    %v1016 = vrot.slane %v995, %v1015
    %1018 = vmatprep.subr.mxu0 0.0
    %1019 = vmatpush1.xpose.msra.mxu0 0.0
    %1020 = vmatprep.subr.mxu0 0.0
    %1021 = vmatpush1.xpose.msra.mxu0 0.0
    %1022 = vmatprep.subr.mxu0 0.0
    %1023 = vmatpush1.xpose.msra.mxu0 0.0
    %1024 = vmatprep.subr.mxu0 0.0
    %1025 = vmatpush1.xpose.msra.mxu0 0.0
    %1026 = vmatprep.subr.mxu0 0.0
    %1027 = vmatpush1.xpose.msra.mxu0 0.0
    %1028 = vmatprep.subr.mxu0 0.0
    %1029 = vmatpush1.xpose.msra.mxu0 0.0
    %1030 = vmatprep.subr.mxu0 0.0
    %1031 = vmatpush1.xpose.msra.mxu0 0.0
    %1032 = vmatprep.subr.mxu0 0.0
    %1033 = vmatpush1.xpose.msra.mxu0 0.0
    %1034 = vmatprep.subr.mxu0 0.0
    %1035 = vmatpush1.xpose.msra.mxu0 0.0
    %1036 = vmatprep.subr.mxu0 0.0
    %1037 = vmatpush1.xpose.msra.mxu0 0.0
    %1038 = vmatprep.subr.mxu0 0.0
    %1039 = vmatpush1.xpose.msra.mxu0 0.0
    %1040 = vmatprep.subr.mxu0 0.0
    %1041 = vmatpush1.xpose.msra.mxu0 0.0
    %1042 = vmatprep.subr.mxu0 0.0
    %1043 = vmatpush1.xpose.msra.mxu0 0.0
    %1044 = vmatprep.subr.mxu0 0.0
    %1045 = vmatpush1.xpose.msra.mxu0 0.0
    %1046 = vmatprep.subr.mxu0 %v988
    %1047 = vmatpush1.xpose.msra.mxu0 %v987
    %1048 = vmatprep.subr.mxu0 %v980
    %1049 = vmatpush1.xpose.msra.mxu0 %v979
    %1050 = vmatprep.subr.mxu0 0.0
    %1051 = vmatpush2.xpose.msra.mxu0 0.0
    %1052 = vmatprep.subr.mxu0 0.0
    %1053 = vmatpush2.xpose.msra.mxu0 0.0
    %1054 = vmatprep.subr.mxu0 0.0
    %1055 = vmatpush2.xpose.msra.mxu0 0.0
    %1056 = vmatprep.subr.mxu0 0.0
    %1057 = vmatpush2.xpose.msra.mxu0 0.0
    %1058 = vmatprep.subr.mxu0 0.0
    %1059 = vmatpush2.xpose.msra.mxu0 0.0
    %1060 = vmatprep.subr.mxu0 0.0
    %1061 = vmatpush2.xpose.msra.mxu0 0.0
    %1062 = vmatprep.subr.mxu0 0.0
    %1063 = vmatpush2.xpose.msra.mxu0 0.0
    %1064 = vmatprep.subr.mxu0 0.0
    %1065 = vmatpush2.xpose.msra.mxu0 0.0
    %1066 = vmatprep.subr.mxu0 0.0
    %1067 = vmatpush2.xpose.msra.mxu0 0.0
    %1068 = vmatprep.subr.mxu0 0.0
    %1069 = vmatpush2.xpose.msra.mxu0 0.0
    %1070 = vmatprep.subr.mxu0 0.0
    %1071 = vmatpush2.xpose.msra.mxu0 0.0
    %1072 = vmatprep.subr.mxu0 0.0
    %1073 = vmatpush2.xpose.msra.mxu0 0.0
    %1074 = vmatprep.subr.mxu0 0.0
    %1075 = vmatpush2.xpose.msra.mxu0 0.0
    %1076 = vmatprep.subr.mxu0 0.0
    %1077 = vmatpush2.xpose.msra.mxu0 0.0
    %1078 = vmatprep.subr.mxu0 0.0
    %1079 = vmatpush2.xpose.msra.mxu0 0.0
    %1080 = vmatprep.subr.mxu0 0.0
    %1081 = vmatpush2.xpose.msra.mxu0 0.0
    %1082 = vmatprep.mubr.f32.mxu0 %v147
    %1083 = vmatmul.mubr.f32.gmra.mxu0 %v139
    %v1084 = vpop.f32.mrf.mxu0
    %v1085 = vadd.f32 %v1016, %v1084
    %v1086 = vpop.f32.mrf.mxu0
    %1087 = vdwg.mxu0
    %1088 = vmatprep.subr.mxu0 0.0
    %1089 = vmatpush1.xpose.msra.mxu0 0.0
    %1090 = vmatprep.subr.mxu0 0.0
    %1091 = vmatpush1.xpose.msra.mxu0 0.0
    %1092 = vmatprep.subr.mxu0 0.0
    %1093 = vmatpush1.xpose.msra.mxu0 0.0
    %1094 = vmatprep.subr.mxu0 0.0
    %1095 = vmatpush1.xpose.msra.mxu0 0.0
    %1096 = vmatprep.subr.mxu0 0.0
    %1097 = vmatpush1.xpose.msra.mxu0 0.0
    %1098 = vmatprep.subr.mxu0 0.0
    %1099 = vmatpush1.xpose.msra.mxu0 0.0
    %1100 = vmatprep.subr.mxu0 0.0
    %1101 = vmatpush1.xpose.msra.mxu0 0.0
    %1102 = vmatprep.subr.mxu0 0.0
    %1103 = vmatpush1.xpose.msra.mxu0 0.0
    %1104 = vmatprep.subr.mxu0 0.0
    %1105 = vmatpush1.xpose.msra.mxu0 0.0
    %1106 = vmatprep.subr.mxu0 0.0
    %1107 = vmatpush1.xpose.msra.mxu0 0.0
    %1108 = vmatprep.subr.mxu0 0.0
    %1109 = vmatpush1.xpose.msra.mxu0 0.0
    %1110 = vmatprep.subr.mxu0 0.0
    %1111 = vmatpush1.xpose.msra.mxu0 0.0
    %1112 = vmatprep.subr.mxu0 0.0
    %1113 = vmatpush1.xpose.msra.mxu0 0.0
    %1114 = vmatprep.subr.mxu0 0.0
    %1115 = vmatpush1.xpose.msra.mxu0 0.0
    %1116 = vmatprep.subr.mxu0 %v990
    %1117 = vmatpush1.xpose.msra.mxu0 %v989
    %1118 = vmatprep.subr.mxu0 %v982
    %1119 = vmatpush1.xpose.msra.mxu0 %v981
    %1120 = vmatprep.subr.mxu0 0.0
    %1121 = vmatpush2.xpose.msra.mxu0 0.0
    %1122 = vmatprep.subr.mxu0 0.0
    %1123 = vmatpush2.xpose.msra.mxu0 0.0
    %1124 = vmatprep.subr.mxu0 0.0
    %1125 = vmatpush2.xpose.msra.mxu0 0.0
    %1126 = vmatprep.subr.mxu0 0.0
    %1127 = vmatpush2.xpose.msra.mxu0 0.0
    %1128 = vmatprep.subr.mxu0 0.0
    %1129 = vmatpush2.xpose.msra.mxu0 0.0
    %1130 = vmatprep.subr.mxu0 0.0
    %1131 = vmatpush2.xpose.msra.mxu0 0.0
    %1132 = vmatprep.subr.mxu0 0.0
    %1133 = vmatpush2.xpose.msra.mxu0 0.0
    %1134 = vmatprep.subr.mxu0 0.0
    %1135 = vmatpush2.xpose.msra.mxu0 0.0
    %1136 = vmatprep.subr.mxu0 0.0
    %1137 = vmatpush2.xpose.msra.mxu0 0.0
    %1138 = vmatprep.subr.mxu0 0.0
    %1139 = vmatpush2.xpose.msra.mxu0 0.0
    %1140 = vmatprep.subr.mxu0 0.0
    %1141 = vmatpush2.xpose.msra.mxu0 0.0
    %1142 = vmatprep.subr.mxu0 0.0
    %1143 = vmatpush2.xpose.msra.mxu0 0.0
    %1144 = vmatprep.subr.mxu0 0.0
    %1145 = vmatpush2.xpose.msra.mxu0 0.0
    %1146 = vmatprep.subr.mxu0 0.0
    %1147 = vmatpush2.xpose.msra.mxu0 0.0
    %1148 = vmatprep.subr.mxu0 0.0
    %1149 = vmatpush2.xpose.msra.mxu0 0.0
    %1150 = vmatprep.subr.mxu0 0.0
    %1151 = vmatpush2.xpose.msra.mxu0 0.0
    %1152 = vmatprep.mubr.f32.mxu0 %v148
    %1153 = vmatmul.mubr.f32.gmra.mxu0 %v146
    %v1154 = vpop.f32.mrf.mxu0
    %v1155 = vadd.f32 %v1085, %v1154
    %v1156 = vpop.f32.mrf.mxu0
    %1157 = vdwg.mxu0
    %1158 = vmatprep.subr.mxu0 0.0
    %1159 = vmatpush1.xpose.msra.mxu0 0.0
    %1160 = vmatprep.subr.mxu0 0.0
    %1161 = vmatpush1.xpose.msra.mxu0 0.0
    %1162 = vmatprep.subr.mxu0 0.0
    %1163 = vmatpush1.xpose.msra.mxu0 0.0
    %1164 = vmatprep.subr.mxu0 0.0
    %1165 = vmatpush1.xpose.msra.mxu0 0.0
    %1166 = vmatprep.subr.mxu0 0.0
    %1167 = vmatpush1.xpose.msra.mxu0 0.0
    %1168 = vmatprep.subr.mxu0 0.0
    %1169 = vmatpush1.xpose.msra.mxu0 0.0
    %1170 = vmatprep.subr.mxu0 0.0
    %1171 = vmatpush1.xpose.msra.mxu0 0.0
    %1172 = vmatprep.subr.mxu0 0.0
    %1173 = vmatpush1.xpose.msra.mxu0 0.0
    %1174 = vmatprep.subr.mxu0 0.0
    %1175 = vmatpush1.xpose.msra.mxu0 0.0
    %1176 = vmatprep.subr.mxu0 0.0
    %1177 = vmatpush1.xpose.msra.mxu0 0.0
    %1178 = vmatprep.subr.mxu0 0.0
    %1179 = vmatpush1.xpose.msra.mxu0 0.0
    %1180 = vmatprep.subr.mxu0 0.0
    %1181 = vmatpush1.xpose.msra.mxu0 0.0
    %1182 = vmatprep.subr.mxu0 0.0
    %1183 = vmatpush1.xpose.msra.mxu0 0.0
    %1184 = vmatprep.subr.mxu0 0.0
    %1185 = vmatpush1.xpose.msra.mxu0 0.0
    %1186 = vmatprep.subr.mxu0 %v992
    %1187 = vmatpush1.xpose.msra.mxu0 %v991
    %1188 = vmatprep.subr.mxu0 %v984
    %1189 = vmatpush1.xpose.msra.mxu0 %v983
    %1190 = vmatprep.subr.mxu0 0.0
    %1191 = vmatpush2.xpose.msra.mxu0 0.0
    %1192 = vmatprep.subr.mxu0 0.0
    %1193 = vmatpush2.xpose.msra.mxu0 0.0
    %1194 = vmatprep.subr.mxu0 0.0
    %1195 = vmatpush2.xpose.msra.mxu0 0.0
    %1196 = vmatprep.subr.mxu0 0.0
    %1197 = vmatpush2.xpose.msra.mxu0 0.0
    %1198 = vmatprep.subr.mxu0 0.0
    %1199 = vmatpush2.xpose.msra.mxu0 0.0
    %1200 = vmatprep.subr.mxu0 0.0
    %1201 = vmatpush2.xpose.msra.mxu0 0.0
    %1202 = vmatprep.subr.mxu0 0.0
    %1203 = vmatpush2.xpose.msra.mxu0 0.0
    %1204 = vmatprep.subr.mxu0 0.0
    %1205 = vmatpush2.xpose.msra.mxu0 0.0
    %1206 = vmatprep.subr.mxu0 0.0
    %1207 = vmatpush2.xpose.msra.mxu0 0.0
    %1208 = vmatprep.subr.mxu0 0.0
    %1209 = vmatpush2.xpose.msra.mxu0 0.0
    %1210 = vmatprep.subr.mxu0 0.0
    %1211 = vmatpush2.xpose.msra.mxu0 0.0
    %1212 = vmatprep.subr.mxu0 0.0
    %1213 = vmatpush2.xpose.msra.mxu0 0.0
    %1214 = vmatprep.subr.mxu0 0.0
    %1215 = vmatpush2.xpose.msra.mxu0 0.0
    %1216 = vmatprep.subr.mxu0 0.0
    %1217 = vmatpush2.xpose.msra.mxu0 0.0
    %1218 = vmatprep.subr.mxu0 0.0
    %1219 = vmatpush2.xpose.msra.mxu0 0.0
    %1220 = vmatprep.subr.mxu0 0.0
    %1221 = vmatpush2.xpose.msra.mxu0 0.0
    %1222 = vmatprep.mubr.f32.mxu0 %v164
    %1223 = vmatmul.mubr.f32.gmra.mxu0 %v156
    %v1224 = vpop.f32.mrf.mxu0
    %v1225 = vadd.f32 %v1155, %v1224
    %v1226 = vpop.f32.mrf.mxu0
    %1227 = vdwg.mxu0
    %1228 = vmatprep.subr.mxu0 0.0
    %1229 = vmatpush1.xpose.msra.mxu0 0.0
    %1230 = vmatprep.subr.mxu0 0.0
    %1231 = vmatpush1.xpose.msra.mxu0 0.0
    %1232 = vmatprep.subr.mxu0 0.0
    %1233 = vmatpush1.xpose.msra.mxu0 0.0
    %1234 = vmatprep.subr.mxu0 0.0
    %1235 = vmatpush1.xpose.msra.mxu0 0.0
    %1236 = vmatprep.subr.mxu0 0.0
    %1237 = vmatpush1.xpose.msra.mxu0 0.0
    %1238 = vmatprep.subr.mxu0 0.0
    %1239 = vmatpush1.xpose.msra.mxu0 0.0
    %1240 = vmatprep.subr.mxu0 0.0
    %1241 = vmatpush1.xpose.msra.mxu0 0.0
    %1242 = vmatprep.subr.mxu0 0.0
    %1243 = vmatpush1.xpose.msra.mxu0 0.0
    %1244 = vmatprep.subr.mxu0 0.0
    %1245 = vmatpush1.xpose.msra.mxu0 0.0
    %1246 = vmatprep.subr.mxu0 0.0
    %1247 = vmatpush1.xpose.msra.mxu0 0.0
    %1248 = vmatprep.subr.mxu0 0.0
    %1249 = vmatpush1.xpose.msra.mxu0 0.0
    %1250 = vmatprep.subr.mxu0 0.0
    %1251 = vmatpush1.xpose.msra.mxu0 0.0
    %1252 = vmatprep.subr.mxu0 0.0
    %1253 = vmatpush1.xpose.msra.mxu0 0.0
    %1254 = vmatprep.subr.mxu0 0.0
    %1255 = vmatpush1.xpose.msra.mxu0 0.0
    %1256 = vmatprep.subr.mxu0 %v994
    %1257 = vmatpush1.xpose.msra.mxu0 %v993
    %1258 = vmatprep.subr.mxu0 %v986
    %1259 = vmatpush1.xpose.msra.mxu0 %v985
    %1260 = vmatprep.subr.mxu0 0.0
    %1261 = vmatpush2.xpose.msra.mxu0 0.0
    %1262 = vmatprep.subr.mxu0 0.0
    %1263 = vmatpush2.xpose.msra.mxu0 0.0
    %1264 = vmatprep.subr.mxu0 0.0
    %1265 = vmatpush2.xpose.msra.mxu0 0.0
    %1266 = vmatprep.subr.mxu0 0.0
    %1267 = vmatpush2.xpose.msra.mxu0 0.0
    %1268 = vmatprep.subr.mxu0 0.0
    %1269 = vmatpush2.xpose.msra.mxu0 0.0
    %1270 = vmatprep.subr.mxu0 0.0
    %1271 = vmatpush2.xpose.msra.mxu0 0.0
    %1272 = vmatprep.subr.mxu0 0.0
    %1273 = vmatpush2.xpose.msra.mxu0 0.0
    %1274 = vmatprep.subr.mxu0 0.0
    %1275 = vmatpush2.xpose.msra.mxu0 0.0
    %1276 = vmatprep.subr.mxu0 0.0
    %1277 = vmatpush2.xpose.msra.mxu0 0.0
    %1278 = vmatprep.subr.mxu0 0.0
    %1279 = vmatpush2.xpose.msra.mxu0 0.0
    %1280 = vmatprep.subr.mxu0 0.0
    %1281 = vmatpush2.xpose.msra.mxu0 0.0
    %1282 = vmatprep.subr.mxu0 0.0
    %1283 = vmatpush2.xpose.msra.mxu0 0.0
    %1284 = vmatprep.subr.mxu0 0.0
    %1285 = vmatpush2.xpose.msra.mxu0 0.0
    %1286 = vmatprep.subr.mxu0 0.0
    %1287 = vmatpush2.xpose.msra.mxu0 0.0
    %1288 = vmatprep.subr.mxu0 0.0
    %1289 = vmatpush2.xpose.msra.mxu0 0.0
    %1290 = vmatprep.subr.mxu0 0.0
    %1291 = vmatpush2.xpose.msra.mxu0 0.0
    %1292 = vmatprep.mubr.f32.mxu0 %v165
    %1293 = vmatmul.mubr.f32.gmra.mxu0 %v163
    %v1294 = vpop.f32.mrf.mxu0
    %v1295 = vadd.f32 %v1225, %v1294
    %v1296 = vpop.f32.mrf.mxu0
    %1297 = vdwg.mxu0
    %1298 = vst.msk [vmem:[#allocation2] sm:$0x3] %vm454, %v1295
    %v1299 = vsel %vm454, %v1295, -inf
    %1300 = vmax.xlane.f32.xlu0 %v1299
    %v1301 = vpop.xlane.xlu0 %1300
    %v1302 = vsub.f32 %v1295, %v1301
    %v1303 = vmul.f32 %v1302, 1.442695
    %v1304 = vpow.pop %v1303
    %v1305 = vsel %vm454, %v1304, 0.0
    %1306 = vadd.xlane.f32.xlu0 %v1305
    %v1307 = vpop.xlane.xlu0 %1306
    %v1308 = vrcp.pop %v1307
    %v1309 = vmul.f32 %v1304, %v1308
    %v1310 = vlog2.pop %v1307
    %v1311 = vmul.f32 %v1310, 0.6931472
    %v1312 = vsub.f32 %v1302, %v1311
    %v1313 = vmul.f32 %v1309, %v1312
    %v1314 = vsel %vm454, %v1313, 0.0
    %1315 = vadd.xlane.f32.xlu0 %v1314
    %v1316 = vpop.xlane.xlu0 %1315
    %v1317 = vsub.f32 0.0, %v1316
    %v1318 = vsub.f32 0.0, %v1309
    %v1319 = vadd.f32 %v1312, %v1317
    %v1320 = vmul.f32 %v1318, %v1319
    %v1321 = vmul.f32 %v1320, 0.0005
    %1322 = vxpose.xlu0.b32.start [1/16] %v1321, 128
    %1323 = vxpose.xlu0.b32.cont [2/16] 0.0, 128
    %1324 = vxpose.xlu0.b32.cont [3/16] 0.0, 128
    %1325 = vxpose.xlu0.b32.cont [4/16] 0.0, 128
    %1326 = vxpose.xlu0.b32.cont [5/16] 0.0, 128
    %1327 = vxpose.xlu0.b32.cont [6/16] 0.0, 128
    %1328 = vxpose.xlu0.b32.cont [7/16] 0.0, 128
    %1329 = vxpose.xlu0.b32.cont [8/16] 0.0, 128
    %1330 = vxpose.xlu0.b32.cont [9/16] 0.0, 128
    %1331 = vxpose.xlu0.b32.cont [10/16] 0.0, 128
    %1332 = vxpose.xlu0.b32.cont [11/16] 0.0, 128
    %1333 = vxpose.xlu0.b32.cont [12/16] 0.0, 128
    %1334 = vxpose.xlu0.b32.cont [13/16] 0.0, 128
    %1335 = vxpose.xlu0.b32.cont [14/16] 0.0, 128
    %1336 = vxpose.xlu0.b32.cont [15/16] 0.0, 128
    %1337 = vxpose.xlu0.b32.end [16/16] 0.0, 128
    %v1338 = vpop.trf.xlu0
    %v1339 = vpop.trf.xlu0
    %v1340 = vpop.trf.xlu0
    %v1341 = vpop.trf.xlu0
    %v1342 = vpop.trf.xlu0
    %v1343 = vpop.trf.xlu0
    %v1344 = vpop.trf.xlu0
    %v1345 = vpop.trf.xlu0
    %v1346 = vpop.trf.xlu0
    %v1347 = vpop.trf.xlu0
    %v1348 = vpop.trf.xlu0
    %v1349 = vpop.trf.xlu0
    %v1350 = vpop.trf.xlu0
    %v1351 = vpop.trf.xlu0
    %v1352 = vpop.trf.xlu0
    %v1353 = vpop.trf.xlu0
    %v1355 = vsel %vm510, %v1338, 0
    %v1358 = vsel %vm510, %v1339, 0
    %1360 = vmatprep.subr.mxu0 0.0
    %1361 = vmatpush1.msra.mxu0 0.0
    %1362 = vmatprep.subr.mxu0 0.0
    %1363 = vmatpush1.msra.mxu0 0.0
    %1364 = vmatprep.subr.mxu0 0.0
    %1365 = vmatpush1.msra.mxu0 0.0
    %1366 = vmatprep.subr.mxu0 0.0
    %1367 = vmatpush1.msra.mxu0 0.0
    %1368 = vmatprep.subr.mxu0 0.0
    %1369 = vmatpush1.msra.mxu0 0.0
    %1370 = vmatprep.subr.mxu0 0.0
    %1371 = vmatpush1.msra.mxu0 0.0
    %1372 = vmatprep.subr.mxu0 0.0
    %1373 = vmatpush1.msra.mxu0 0.0
    %1374 = vmatprep.subr.mxu0 0.0
    %1375 = vmatpush1.msra.mxu0 0.0
    %1376 = vmatprep.subr.mxu0 0.0
    %1377 = vmatpush1.msra.mxu0 0.0
    %1378 = vmatprep.subr.mxu0 0.0
    %1379 = vmatpush1.msra.mxu0 0.0
    %1380 = vmatprep.subr.mxu0 0.0
    %1381 = vmatpush1.msra.mxu0 0.0
    %1382 = vmatprep.subr.mxu0 0.0
    %1383 = vmatpush1.msra.mxu0 0.0
    %1384 = vmatprep.subr.mxu0 0.0
    %1385 = vmatpush1.msra.mxu0 0.0
    %1386 = vmatprep.subr.mxu0 0.0
    %1387 = vmatpush1.msra.mxu0 0.0
    %1388 = vmatprep.subr.mxu0 0.0
    %1389 = vmatpush1.msra.mxu0 0.0
    %1390 = vmatprep.subr.mxu0 %v520
    %1391 = vmatpush1.msra.mxu0 %v518
    %1392 = vmatprep.subr.mxu0 0.0
    %1393 = vmatpush2.msra.mxu0 0.0
    %1394 = vmatprep.subr.mxu0 0.0
    %1395 = vmatpush2.msra.mxu0 0.0
    %1396 = vmatprep.subr.mxu0 0.0
    %1397 = vmatpush2.msra.mxu0 0.0
    %1398 = vmatprep.subr.mxu0 0.0
    %1399 = vmatpush2.msra.mxu0 0.0
    %1400 = vmatprep.subr.mxu0 0.0
    %1401 = vmatpush2.msra.mxu0 0.0
    %1402 = vmatprep.subr.mxu0 0.0
    %1403 = vmatpush2.msra.mxu0 0.0
    %1404 = vmatprep.subr.mxu0 0.0
    %1405 = vmatpush2.msra.mxu0 0.0
    %1406 = vmatprep.subr.mxu0 0.0
    %1407 = vmatpush2.msra.mxu0 0.0
    %1408 = vmatprep.subr.mxu0 0.0
    %1409 = vmatpush2.msra.mxu0 0.0
    %1410 = vmatprep.subr.mxu0 0.0
    %1411 = vmatpush2.msra.mxu0 0.0
    %1412 = vmatprep.subr.mxu0 0.0
    %1413 = vmatpush2.msra.mxu0 0.0
    %1414 = vmatprep.subr.mxu0 0.0
    %1415 = vmatpush2.msra.mxu0 0.0
    %1416 = vmatprep.subr.mxu0 0.0
    %1417 = vmatpush2.msra.mxu0 0.0
    %1418 = vmatprep.subr.mxu0 0.0
    %1419 = vmatpush2.msra.mxu0 0.0
    %1420 = vmatprep.subr.mxu0 0.0
    %1421 = vmatpush2.msra.mxu0 0.0
    %1422 = vmatprep.subr.mxu0 0.0
    %1423 = vmatpush2.msra.mxu0 0.0
    %1424 = vmatprep.mubr.f32.mxu0 0.0
    %1425 = vmatmul.mubr.f32.gmra.mxu0 %v1355
    %v1426 = vpop.f32.mrf.mxu0
    %v1427 = vadd.f32 0.0, %v1426
    %v1428 = vpop.f32.mrf.mxu0
    %v1429 = vadd.f32 0.0, %v1428
    %1430 = vmatprep.mubr.f32.mxu0 0.0
    %1431 = vmatmul.mubr.f32.gmra.mxu0 %v1358
    %v1432 = vpop.f32.mrf.mxu0
    %v1433 = vadd.f32 0.0, %v1432
    %v1434 = vpop.f32.mrf.mxu0
    %v1435 = vadd.f32 0.0, %v1434
    %1436 = vdwg.mxu0
    %1437 = vmatprep.subr.mxu0 0.0
    %1438 = vmatpush1.msra.mxu0 0.0
    %1439 = vmatprep.subr.mxu0 0.0
    %1440 = vmatpush1.msra.mxu0 0.0
    %1441 = vmatprep.subr.mxu0 0.0
    %1442 = vmatpush1.msra.mxu0 0.0
    %1443 = vmatprep.subr.mxu0 0.0
    %1444 = vmatpush1.msra.mxu0 0.0
    %1445 = vmatprep.subr.mxu0 0.0
    %1446 = vmatpush1.msra.mxu0 0.0
    %1447 = vmatprep.subr.mxu0 0.0
    %1448 = vmatpush1.msra.mxu0 0.0
    %1449 = vmatprep.subr.mxu0 0.0
    %1450 = vmatpush1.msra.mxu0 0.0
    %1451 = vmatprep.subr.mxu0 0.0
    %1452 = vmatpush1.msra.mxu0 0.0
    %1453 = vmatprep.subr.mxu0 0.0
    %1454 = vmatpush1.msra.mxu0 0.0
    %1455 = vmatprep.subr.mxu0 0.0
    %1456 = vmatpush1.msra.mxu0 0.0
    %1457 = vmatprep.subr.mxu0 0.0
    %1458 = vmatpush1.msra.mxu0 0.0
    %1459 = vmatprep.subr.mxu0 0.0
    %1460 = vmatpush1.msra.mxu0 0.0
    %1461 = vmatprep.subr.mxu0 0.0
    %1462 = vmatpush1.msra.mxu0 0.0
    %1463 = vmatprep.subr.mxu0 0.0
    %1464 = vmatpush1.msra.mxu0 0.0
    %1465 = vmatprep.subr.mxu0 0.0
    %1466 = vmatpush1.msra.mxu0 0.0
    %1467 = vmatprep.subr.mxu0 %v524
    %1468 = vmatpush1.msra.mxu0 %v522
    %1469 = vmatprep.subr.mxu0 0.0
    %1470 = vmatpush2.msra.mxu0 0.0
    %1471 = vmatprep.subr.mxu0 0.0
    %1472 = vmatpush2.msra.mxu0 0.0
    %1473 = vmatprep.subr.mxu0 0.0
    %1474 = vmatpush2.msra.mxu0 0.0
    %1475 = vmatprep.subr.mxu0 0.0
    %1476 = vmatpush2.msra.mxu0 0.0
    %1477 = vmatprep.subr.mxu0 0.0
    %1478 = vmatpush2.msra.mxu0 0.0
    %1479 = vmatprep.subr.mxu0 0.0
    %1480 = vmatpush2.msra.mxu0 0.0
    %1481 = vmatprep.subr.mxu0 0.0
    %1482 = vmatpush2.msra.mxu0 0.0
    %1483 = vmatprep.subr.mxu0 0.0
    %1484 = vmatpush2.msra.mxu0 0.0
    %1485 = vmatprep.subr.mxu0 0.0
    %1486 = vmatpush2.msra.mxu0 0.0
    %1487 = vmatprep.subr.mxu0 0.0
    %1488 = vmatpush2.msra.mxu0 0.0
    %1489 = vmatprep.subr.mxu0 0.0
    %1490 = vmatpush2.msra.mxu0 0.0
    %1491 = vmatprep.subr.mxu0 0.0
    %1492 = vmatpush2.msra.mxu0 0.0
    %1493 = vmatprep.subr.mxu0 0.0
    %1494 = vmatpush2.msra.mxu0 0.0
    %1495 = vmatprep.subr.mxu0 0.0
    %1496 = vmatpush2.msra.mxu0 0.0
    %1497 = vmatprep.subr.mxu0 0.0
    %1498 = vmatpush2.msra.mxu0 0.0
    %1499 = vmatprep.subr.mxu0 0.0
    %1500 = vmatpush2.msra.mxu0 0.0
    %1501 = vmatprep.mubr.f32.mxu0 0.0
    %1502 = vmatmul.mubr.f32.gmra.mxu0 %v1355
    %v1503 = vpop.f32.mrf.mxu0
    %v1504 = vadd.f32 0.0, %v1503
    %v1505 = vpop.f32.mrf.mxu0
    %v1506 = vadd.f32 0.0, %v1505
    %1507 = vmatprep.mubr.f32.mxu0 0.0
    %1508 = vmatmul.mubr.f32.gmra.mxu0 %v1358
    %v1509 = vpop.f32.mrf.mxu0
    %v1510 = vadd.f32 0.0, %v1509
    %v1511 = vpop.f32.mrf.mxu0
    %v1512 = vadd.f32 0.0, %v1511
    %1513 = vdwg.mxu0
    %1514 = vmatprep.subr.mxu0 0.0
    %1515 = vmatpush1.msra.mxu0 0.0
    %1516 = vmatprep.subr.mxu0 0.0
    %1517 = vmatpush1.msra.mxu0 0.0
    %1518 = vmatprep.subr.mxu0 0.0
    %1519 = vmatpush1.msra.mxu0 0.0
    %1520 = vmatprep.subr.mxu0 0.0
    %1521 = vmatpush1.msra.mxu0 0.0
    %1522 = vmatprep.subr.mxu0 0.0
    %1523 = vmatpush1.msra.mxu0 0.0
    %1524 = vmatprep.subr.mxu0 0.0
    %1525 = vmatpush1.msra.mxu0 0.0
    %1526 = vmatprep.subr.mxu0 0.0
    %1527 = vmatpush1.msra.mxu0 0.0
    %1528 = vmatprep.subr.mxu0 0.0
    %1529 = vmatpush1.msra.mxu0 0.0
    %1530 = vmatprep.subr.mxu0 0.0
    %1531 = vmatpush1.msra.mxu0 0.0
    %1532 = vmatprep.subr.mxu0 0.0
    %1533 = vmatpush1.msra.mxu0 0.0
    %1534 = vmatprep.subr.mxu0 0.0
    %1535 = vmatpush1.msra.mxu0 0.0
    %1536 = vmatprep.subr.mxu0 0.0
    %1537 = vmatpush1.msra.mxu0 0.0
    %1538 = vmatprep.subr.mxu0 0.0
    %1539 = vmatpush1.msra.mxu0 0.0
    %1540 = vmatprep.subr.mxu0 0.0
    %1541 = vmatpush1.msra.mxu0 0.0
    %1542 = vmatprep.subr.mxu0 0.0
    %1543 = vmatpush1.msra.mxu0 0.0
    %1544 = vmatprep.subr.mxu0 %v528
    %1545 = vmatpush1.msra.mxu0 %v526
    %1546 = vmatprep.subr.mxu0 0.0
    %1547 = vmatpush2.msra.mxu0 0.0
    %1548 = vmatprep.subr.mxu0 0.0
    %1549 = vmatpush2.msra.mxu0 0.0
    %1550 = vmatprep.subr.mxu0 0.0
    %1551 = vmatpush2.msra.mxu0 0.0
    %1552 = vmatprep.subr.mxu0 0.0
    %1553 = vmatpush2.msra.mxu0 0.0
    %1554 = vmatprep.subr.mxu0 0.0
    %1555 = vmatpush2.msra.mxu0 0.0
    %1556 = vmatprep.subr.mxu0 0.0
    %1557 = vmatpush2.msra.mxu0 0.0
    %1558 = vmatprep.subr.mxu0 0.0
    %1559 = vmatpush2.msra.mxu0 0.0
    %1560 = vmatprep.subr.mxu0 0.0
    %1561 = vmatpush2.msra.mxu0 0.0
    %1562 = vmatprep.subr.mxu0 0.0
    %1563 = vmatpush2.msra.mxu0 0.0
    %1564 = vmatprep.subr.mxu0 0.0
    %1565 = vmatpush2.msra.mxu0 0.0
    %1566 = vmatprep.subr.mxu0 0.0
    %1567 = vmatpush2.msra.mxu0 0.0
    %1568 = vmatprep.subr.mxu0 0.0
    %1569 = vmatpush2.msra.mxu0 0.0
    %1570 = vmatprep.subr.mxu0 0.0
    %1571 = vmatpush2.msra.mxu0 0.0
    %1572 = vmatprep.subr.mxu0 0.0
    %1573 = vmatpush2.msra.mxu0 0.0
    %1574 = vmatprep.subr.mxu0 0.0
    %1575 = vmatpush2.msra.mxu0 0.0
    %1576 = vmatprep.subr.mxu0 0.0
    %1577 = vmatpush2.msra.mxu0 0.0
    %1578 = vmatprep.mubr.f32.mxu0 0.0
    %1579 = vmatmul.mubr.f32.gmra.mxu0 %v1355
    %v1580 = vpop.f32.mrf.mxu0
    %v1581 = vadd.f32 0.0, %v1580
    %v1582 = vpop.f32.mrf.mxu0
    %v1583 = vadd.f32 0.0, %v1582
    %1584 = vmatprep.mubr.f32.mxu0 0.0
    %1585 = vmatmul.mubr.f32.gmra.mxu0 %v1358
    %v1586 = vpop.f32.mrf.mxu0
    %v1587 = vadd.f32 0.0, %v1586
    %v1588 = vpop.f32.mrf.mxu0
    %v1589 = vadd.f32 0.0, %v1588
    %1590 = vdwg.mxu0
    %1591 = vmatprep.subr.mxu0 0.0
    %1592 = vmatpush1.msra.mxu0 0.0
    %1593 = vmatprep.subr.mxu0 0.0
    %1594 = vmatpush1.msra.mxu0 0.0
    %1595 = vmatprep.subr.mxu0 0.0
    %1596 = vmatpush1.msra.mxu0 0.0
    %1597 = vmatprep.subr.mxu0 0.0
    %1598 = vmatpush1.msra.mxu0 0.0
    %1599 = vmatprep.subr.mxu0 0.0
    %1600 = vmatpush1.msra.mxu0 0.0
    %1601 = vmatprep.subr.mxu0 0.0
    %1602 = vmatpush1.msra.mxu0 0.0
    %1603 = vmatprep.subr.mxu0 0.0
    %1604 = vmatpush1.msra.mxu0 0.0
    %1605 = vmatprep.subr.mxu0 0.0
    %1606 = vmatpush1.msra.mxu0 0.0
    %1607 = vmatprep.subr.mxu0 0.0
    %1608 = vmatpush1.msra.mxu0 0.0
    %1609 = vmatprep.subr.mxu0 0.0
    %1610 = vmatpush1.msra.mxu0 0.0
    %1611 = vmatprep.subr.mxu0 0.0
    %1612 = vmatpush1.msra.mxu0 0.0
    %1613 = vmatprep.subr.mxu0 0.0
    %1614 = vmatpush1.msra.mxu0 0.0
    %1615 = vmatprep.subr.mxu0 0.0
    %1616 = vmatpush1.msra.mxu0 0.0
    %1617 = vmatprep.subr.mxu0 0.0
    %1618 = vmatpush1.msra.mxu0 0.0
    %1619 = vmatprep.subr.mxu0 0.0
    %1620 = vmatpush1.msra.mxu0 0.0
    %1621 = vmatprep.subr.mxu0 %v532
    %1622 = vmatpush1.msra.mxu0 %v530
    %1623 = vmatprep.subr.mxu0 0.0
    %1624 = vmatpush2.msra.mxu0 0.0
    %1625 = vmatprep.subr.mxu0 0.0
    %1626 = vmatpush2.msra.mxu0 0.0
    %1627 = vmatprep.subr.mxu0 0.0
    %1628 = vmatpush2.msra.mxu0 0.0
    %1629 = vmatprep.subr.mxu0 0.0
    %1630 = vmatpush2.msra.mxu0 0.0
    %1631 = vmatprep.subr.mxu0 0.0
    %1632 = vmatpush2.msra.mxu0 0.0
    %1633 = vmatprep.subr.mxu0 0.0
    %1634 = vmatpush2.msra.mxu0 0.0
    %1635 = vmatprep.subr.mxu0 0.0
    %1636 = vmatpush2.msra.mxu0 0.0
    %1637 = vmatprep.subr.mxu0 0.0
    %1638 = vmatpush2.msra.mxu0 0.0
    %1639 = vmatprep.subr.mxu0 0.0
    %1640 = vmatpush2.msra.mxu0 0.0
    %1641 = vmatprep.subr.mxu0 0.0
    %1642 = vmatpush2.msra.mxu0 0.0
    %1643 = vmatprep.subr.mxu0 0.0
    %1644 = vmatpush2.msra.mxu0 0.0
    %1645 = vmatprep.subr.mxu0 0.0
    %1646 = vmatpush2.msra.mxu0 0.0
    %1647 = vmatprep.subr.mxu0 0.0
    %1648 = vmatpush2.msra.mxu0 0.0
    %1649 = vmatprep.subr.mxu0 0.0
    %1650 = vmatpush2.msra.mxu0 0.0
    %1651 = vmatprep.subr.mxu0 0.0
    %1652 = vmatpush2.msra.mxu0 0.0
    %1653 = vmatprep.subr.mxu0 0.0
    %1654 = vmatpush2.msra.mxu0 0.0
    %1655 = vmatprep.mubr.f32.mxu0 0.0
    %1656 = vmatmul.mubr.f32.gmra.mxu0 %v1355
    %v1657 = vpop.f32.mrf.mxu0
    %v1658 = vadd.f32 0.0, %v1657
    %v1659 = vpop.f32.mrf.mxu0
    %v1660 = vadd.f32 0.0, %v1659
    %1661 = vmatprep.mubr.f32.mxu0 0.0
    %1662 = vmatmul.mubr.f32.gmra.mxu0 %v1358
    %v1663 = vpop.f32.mrf.mxu0
    %v1664 = vadd.f32 0.0, %v1663
    %v1665 = vpop.f32.mrf.mxu0
    %v1666 = vadd.f32 0.0, %v1665
    %1667 = vdwg.mxu0
    %v1668 = vsel %vm454, %v1321, 0.0
    %v1669 = vrot.slane %v1668, 4
    %v1670 = vadd.f32 %v1668, %v1669
    %v1671 = vrot.slane %v1670, 2
    %v1672 = vadd.f32 %v1670, %v1671
    %v1673 = vrot.slane %v1672, 1
    %v1674 = vadd.f32 %v1672, %v1673
    %v1675 = vsub.f32 %v979, %v1427
    %v1676 = vsub.f32 %v980, %v1429
    %v1677 = vsub.f32 %v981, %v1504
    %v1678 = vsub.f32 %v982, %v1506
    %v1679 = vsub.f32 %v983, %v1581
    %v1680 = vsub.f32 %v984, %v1583
    %v1681 = vsub.f32 %v985, %v1658
    %v1682 = vsub.f32 %v986, %v1660
    %v1683 = vsub.f32 %v987, %v1433
    %v1684 = vsub.f32 %v988, %v1435
    %v1685 = vsub.f32 %v989, %v1510
    %v1686 = vsub.f32 %v990, %v1512
    %v1687 = vsub.f32 %v991, %v1587
    %v1688 = vsub.f32 %v992, %v1589
    %v1689 = vsub.f32 %v993, %v1664
    %v1690 = vsub.f32 %v994, %v1666
    %1691 = vst [vmem:[%s5] sm:$0xff] %v1675
    %1692 = vst [vmem:[%s5 + $0x8] sm:$0xff] %v1676
    %1693 = vst [vmem:[%s5 + $0x10] sm:$0xff] %v1677
    %1694 = vst [vmem:[%s5 + $0x18] sm:$0xff] %v1678
    %1695 = vst [vmem:[%s5 + $0x20] sm:$0xff] %v1679
    %1696 = vst [vmem:[%s5 + $0x28] sm:$0xff] %v1680
    %1697 = vst [vmem:[%s5 + $0x30] sm:$0xff] %v1681
    %1698 = vst [vmem:[%s5 + $0x38] sm:$0xff] %v1682
    %1699 = vst [vmem:[%s5 + $0x40] sm:$0x3] %v1683
    %1700 = vst [vmem:[%s5 + $0x48] sm:$0x3] %v1684
    %1701 = vst [vmem:[%s5 + $0x50] sm:$0x3] %v1685
    %1702 = vst [vmem:[%s5 + $0x58] sm:$0x3] %v1686
    %1703 = vst [vmem:[%s5 + $0x60] sm:$0x3] %v1687
    %1704 = vst [vmem:[%s5 + $0x68] sm:$0x3] %v1688
    %1705 = vst [vmem:[%s5 + $0x70] sm:$0x3] %v1689
    %1706 = vst [vmem:[%s5 + $0x78] sm:$0x3] %v1690
    %v1707 = vsub.f32 %v995, %v1674
    %1708 = vst.msk [vmem:[%s6] sm:$0x1] %vm57, %v1707
    %v1709 = vadd.f32 %v996, 4.8828124e-08
    %v1710 = vadd.f32 %v997, 4.8828124e-08
    %v1711 = vadd.f32 %v998, 4.8828124e-08
    %v1712 = vadd.f32 %v999, 4.8828124e-08
    %v1713 = vadd.f32 %v1000, 4.8828124e-08
    %v1714 = vadd.f32 %v1001, 4.8828124e-08
    %v1715 = vadd.f32 %v1002, 4.8828124e-08
    %v1716 = vadd.f32 %v1003, 4.8828124e-08
    %v1717 = vadd.f32 %v1004, 4.8828124e-08
    %v1718 = vadd.f32 %v1005, 4.8828124e-08
    %v1719 = vadd.f32 %v1006, 4.8828124e-08
    %v1720 = vadd.f32 %v1007, 4.8828124e-08
    %v1721 = vadd.f32 %v1008, 4.8828124e-08
    %v1722 = vadd.f32 %v1009, 4.8828124e-08
    %v1723 = vadd.f32 %v1010, 4.8828124e-08
    %v1724 = vadd.f32 %v1011, 4.8828124e-08
    %v1725 = vmul.f32 %v996, 1.442695
    %v1726 = vpow.pop %v1725
    %v1727 = vmul.f32 %v997, 1.442695
    %v1728 = vpow.pop %v1727
    %v1729 = vmul.f32 %v998, 1.442695
    %v1730 = vpow.pop %v1729
    %v1731 = vmul.f32 %v999, 1.442695
    %v1732 = vpow.pop %v1731
    %v1733 = vmul.f32 %v1000, 1.442695
    %v1734 = vpow.pop %v1733
    %v1735 = vmul.f32 %v1001, 1.442695
    %v1736 = vpow.pop %v1735
    %v1737 = vmul.f32 %v1002, 1.442695
    %v1738 = vpow.pop %v1737
    %v1739 = vmul.f32 %v1003, 1.442695
    %v1740 = vpow.pop %v1739
    %v1741 = vmul.f32 %v1004, 1.442695
    %v1742 = vpow.pop %v1741
    %v1743 = vmul.f32 %v1005, 1.442695
    %v1744 = vpow.pop %v1743
    %v1745 = vmul.f32 %v1006, 1.442695
    %v1746 = vpow.pop %v1745
    %v1747 = vmul.f32 %v1007, 1.442695
    %v1748 = vpow.pop %v1747
    %v1749 = vmul.f32 %v1008, 1.442695
    %v1750 = vpow.pop %v1749
    %v1751 = vmul.f32 %v1009, 1.442695
    %v1752 = vpow.pop %v1751
    %v1753 = vmul.f32 %v1010, 1.442695
    %v1754 = vpow.pop %v1753
    %v1755 = vmul.f32 %v1011, 1.442695
    %v1756 = vpow.pop %v1755
    %v1757 = vmul.f32 %v1726, 4.882813e-07
    %v1758 = vmul.f32 %v1728, 4.882813e-07
    %v1759 = vmul.f32 %v1730, 4.882813e-07
    %v1760 = vmul.f32 %v1732, 4.882813e-07
    %v1761 = vmul.f32 %v1734, 4.882813e-07
    %v1762 = vmul.f32 %v1736, 4.882813e-07
    %v1763 = vmul.f32 %v1738, 4.882813e-07
    %v1764 = vmul.f32 %v1740, 4.882813e-07
    %v1765 = vmul.f32 %v1742, 4.882813e-07
    %v1766 = vmul.f32 %v1744, 4.882813e-07
    %v1767 = vmul.f32 %v1746, 4.882813e-07
    %v1768 = vmul.f32 %v1748, 4.882813e-07
    %v1769 = vmul.f32 %v1750, 4.882813e-07
    %v1770 = vmul.f32 %v1752, 4.882813e-07
    %v1771 = vmul.f32 %v1754, 4.882813e-07
    %v1772 = vmul.f32 %v1756, 4.882813e-07
    %v1773 = vsub.f32 %v1709, %v1757
    %v1774 = vsub.f32 %v1710, %v1758
    %v1775 = vsub.f32 %v1711, %v1759
    %v1776 = vsub.f32 %v1712, %v1760
    %v1777 = vsub.f32 %v1713, %v1761
    %v1778 = vsub.f32 %v1714, %v1762
    %v1779 = vsub.f32 %v1715, %v1763
    %v1780 = vsub.f32 %v1716, %v1764
    %v1781 = vsub.f32 %v1717, %v1765
    %v1782 = vsub.f32 %v1718, %v1766
    %v1783 = vsub.f32 %v1719, %v1767
    %v1784 = vsub.f32 %v1720, %v1768
    %v1785 = vsub.f32 %v1721, %v1769
    %v1786 = vsub.f32 %v1722, %v1770
    %v1787 = vsub.f32 %v1723, %v1771
    %v1788 = vsub.f32 %v1724, %v1772
    %1789 = vst [vmem:[%s7] sm:$0xff] %v1773
    %1790 = vst [vmem:[%s7 + $0x8] sm:$0xff] %v1774
    %1791 = vst [vmem:[%s7 + $0x10] sm:$0xff] %v1775
    %1792 = vst [vmem:[%s7 + $0x18] sm:$0xff] %v1776
    %1793 = vst [vmem:[%s7 + $0x20] sm:$0xff] %v1777
    %1794 = vst [vmem:[%s7 + $0x28] sm:$0xff] %v1778
    %1795 = vst [vmem:[%s7 + $0x30] sm:$0xff] %v1779
    %1796 = vst [vmem:[%s7 + $0x38] sm:$0xff] %v1780
    %1797 = vst [vmem:[%s7 + $0x40] sm:$0x3] %v1781
    %1798 = vst [vmem:[%s7 + $0x48] sm:$0x3] %v1782
    %1799 = vst [vmem:[%s7 + $0x50] sm:$0x3] %v1783
    %1800 = vst [vmem:[%s7 + $0x58] sm:$0x3] %v1784
    %1801 = vst [vmem:[%s7 + $0x60] sm:$0x3] %v1785
    %1802 = vst [vmem:[%s7 + $0x68] sm:$0x3] %v1786
    %1803 = vst [vmem:[%s7 + $0x70] sm:$0x3] %v1787
    %1804 = vst [vmem:[%s7 + $0x78] sm:$0x3] %v1788
    // Predicated region
    $region18: #{_mop_forward_impl.1} parent=1 // pred_check
      _
    $region19: #{_mop_forward_impl.1} parent=1 // pred_check_branch
      %1806 = sbr.rel (0) target = $region21
    $region20: #{_mop_forward_impl.1} parent=1 // pred_region
      %s1808 = ssub.s32 32, 32
      %1809 = vsyncadd [#allocation3], %s1808
      %s1811 = sshll.u32 [#allocation2], 4
      %s1812 = int_to_ptr.vmem [resolvable:$true] %s1811
      %1814 = dma.vmem_to_hbm [thread:$0]  %s1812, 32, %s4, [#allocation3]
    $region21: #{_mop_forward_impl.1} parent=1 // pred_fallthru
      _
    // Predicated region
    $region22: #{_mop_forward_impl.1} parent=1 // pred_check
      _
    $region23: #{_mop_forward_impl.1} parent=1 // pred_check_branch
      %1816 = sbr.rel (0) target = $region25
    $region24: #{_mop_forward_impl.1} parent=1 // pred_region
      _
    $region25: #{_mop_forward_impl.1} parent=1 // pred_fallthru
      _
    // Predicated region
    $region26: #{_mop_forward_impl.1} parent=1 // pred_check
      _
    $region27: #{_mop_forward_impl.1} parent=1 // pred_check_branch
      %1818 = sbr.rel (0) target = $region29
    $region28: #{_mop_forward_impl.1} parent=1 // pred_region
      _
    $region29: #{_mop_forward_impl.1} parent=1 // pred_fallthru
      _
    // Predicated region
    $region30: #{_mop_forward_impl.1} parent=1 // pred_check
      _
    $region31: #{_mop_forward_impl.1} parent=1 // pred_check_branch
      %1820 = sbr.rel (0) target = $region33
    $region32: #{_mop_forward_impl.1} parent=1 // pred_region
      _
    $region33: #{_mop_forward_impl.1} parent=1 // pred_fallthru
      _
    // Predicated region
    $region34: #{_mop_forward_impl.1} parent=1 // pred_check
      _
    $region35: #{_mop_forward_impl.1} parent=1 // pred_check_branch
      %1822 = sbr.rel (0) target = $region37
    $region36: #{_mop_forward_impl.1} parent=1 // pred_region
      %1823 = dma.done [#allocation3], 32
    $region37: #{_mop_forward_impl.1} parent=1 // pred_fallthru
      _
    // Predicated region
    $region38: #{_mop_forward_impl.1} parent=1 // pred_check
      _
    $region39: #{_mop_forward_impl.1} parent=1 // pred_check_branch
      %1825 = sbr.rel (0) target = $region41
    $region40: #{_mop_forward_impl.1} parent=1 // pred_region
      _
    $region41: #{_mop_forward_impl.1} parent=1 // pred_fallthru
      _
    // Predicated region
    $region42: #{_mop_forward_impl.1} parent=1 // pred_check
      _
    $region43: #{_mop_forward_impl.1} parent=1 // pred_check_branch
      %1827 = sbr.rel (0) target = $region45
    $region44: #{_mop_forward_impl.1} parent=1 // pred_region
      _
    $region45: #{_mop_forward_impl.1} parent=1 // pred_fallthru
      _
    // Predicated region
    $region46: #{_mop_forward_impl.1} parent=1 // pred_check
      _
    $region47: #{_mop_forward_impl.1} parent=1 // pred_check_branch
      %1829 = sbr.rel (0) target = $region49
    $region48: #{_mop_forward_impl.1} parent=1 // pred_region
      _
    $region49: #{_mop_forward_impl.1} parent=1 // pred_fallthru
      _
    %1830 = vsyncpa [#allocation3], 1

</llo_original>
